<compile_context>
chip_gen: v5e
topology: v5e:2x2
jax: 0.10.0
libtpu: 0.0.40
codegen_flags: <defaults>
</compile_context>

<pallas_src>
import jax
import jax.numpy as jnp
from jax import lax
from jax.experimental import pallas as pl
from jax.experimental.pallas import tpu as pltpu

_LANE = 128
_SUBLANE = 8


def _lstm_forecast_kernel(x_ref, wih_ref, whh_ref, b_ref, wout_ref, bout_ref,
                          out_ref, xp_ref):
    """Single-layer LSTM unroll + linear head, entirely in VMEM/vregs.

    x_ref   : (T, Bt, I)    time-major input tile (Bt % 8 == 0)
    wih_ref : (I, 4*Hp)     input->gates weights, gate order [i, f, g, o],
                            each gate block lane-padded to Hp = 128
    whh_ref : (Hp, 4*Hp)    hidden->gates weights (rows >= H zero-padded)
    b_ref   : (1, 4*Hp)     combined bias (b_ih + b_hh), lane-padded
    wout_ref: (1, Hp)       final Linear weight as a row (lanes >= H zero)
    bout_ref: (1, 1)        final Linear bias
    out_ref : (Bt, 1)       output tile
    xp_ref  : (T, Bt, 4*Hp) VMEM scratch holding the hoisted input projection
    """
    T, Bt, I = x_ref.shape
    Hp = whh_ref.shape[0]
    G4 = 4 * Hp

    # --- Prologue: hoisted input projection for ALL T steps (one MXU matmul,
    # bias folded in once), stored time-major in VMEM scratch. Bt % 8 == 0, so
    # the leading-dim merge/split reshapes below are pure relabelings (no vreg
    # shuffles / VMEM relayout copies).
    x_flat = x_ref[...].reshape(T * Bt, I)
    xp = jnp.dot(x_flat, wih_ref[...], preferred_element_type=jnp.float32)
    xp_ref[...] = (xp + b_ref[...]).reshape(T, Bt, G4)

    h = jnp.zeros((Bt, Hp), jnp.float32)
    c = jnp.zeros((Bt, Hp), jnp.float32)

    # --- Fully unrolled recurrence (T static & small; switch to
    # lax.fori_loop(..., unroll=4..8) if T grows beyond ~16). Exactly one MXU
    # dot on the serial dependency chain per step; the per-step gate addend is
    # a clean leading-dim slab load that overlaps with the matmul. W_hh is
    # read from VMEM inside the dot (never materialized as a 256 KiB value in
    # the vreg file).
    # TODO(synk): if a bundle dump shows Mosaic re-staging W_hh into the MXU on
    # every unrolled step, hoist the RHS push once via pltpu.matmul_push_rhs /
    # matmul_acc_lhs / matmul_pop (generation-specific MXU tile split).
    for t in range(T):
        gates = xp_ref[t] + jnp.dot(h, whh_ref[...],
                                    preferred_element_type=jnp.float32)
        i_g = jax.nn.sigmoid(gates[:, 0 * Hp:1 * Hp])
        f_g = jax.nn.sigmoid(gates[:, 1 * Hp:2 * Hp])
        g_g = jnp.tanh(gates[:, 2 * Hp:3 * Hp])
        o_g = jax.nn.sigmoid(gates[:, 3 * Hp:4 * Hp])
        c = f_g * c + i_g * g_g
        h = o_g * jnp.tanh(c)

    # --- Head: Dropout is identity in eval mode; output_size == 1, so use a
    # VPU multiply + XLU lane reduce instead of a 1-lane MXU matmul.
    # (For production batch sizes a lane-dense (1, B) output slab would avoid
    # masked vst.msk stores; negligible at these shapes.)
    out = jnp.sum(h * wout_ref[...], axis=-1, keepdims=True) + bout_ref[...]
    out_ref[...] = out.astype(out_ref.dtype)


def _round_up(n, m):
    return ((n + m - 1) // m) * m


def _pad_gate_cols(w, H, Hp):
    """(rows, 4H) gate-ordered [i,f,g,o] -> (rows, 4*Hp), each gate block placed
    at a 128-lane-aligned offset, zero padded (pads must stay exactly zero)."""
    rows = w.shape[0]
    out = jnp.zeros((rows, 4 * Hp), jnp.float32)
    for k in range(4):
        out = out.at[:, k * Hp:k * Hp + H].set(w[:, k * H:(k + 1) * H])
    return out


def forecast_model_forward(x, params, *, hidden_size, batch_tile=None):
    """x: (B, T, I) batch-first (PyTorch convention). Returns (B,)."""
    B, T, I = x.shape
    wih, whh, bias, wout, bout = params
    H = hidden_size
    O = wout.shape[1]
    assert O == 1, "head is specialized for output_size == 1 (as in the module)"

    Hp = _round_up(max(H, 1), _LANE)
    G4 = 4 * Hp

    # One-time weight re-layout (tiny, outside the kernel).
    wih_p = _pad_gate_cols(wih, H, Hp)                                   # (I, 4Hp)
    whh_p = jnp.zeros((Hp, G4), jnp.float32).at[:H, :].set(
        _pad_gate_cols(whh, H, Hp))                                      # (Hp, 4Hp)
    b_p = _pad_gate_cols(bias, H, Hp)                                    # (1, 4Hp)
    wout_p = jnp.zeros((1, Hp), jnp.float32).at[0, :H].set(wout[:, 0])   # (1, Hp)
    bout_p = bout.reshape(1, 1).astype(jnp.float32)

    # Batch tiling: pad B to a multiple of 8 sublanes and tile it over a
    # "parallel" grid axis (2 TensorCores on v7x; harmless on v5e/v6e).
    if batch_tile is None:
        batch_tile = min(_round_up(B, _SUBLANE), 128)
    Bt = _round_up(batch_tile, _SUBLANE)
    Bp = _round_up(B, Bt)
    n_tiles = Bp // Bt

    # Wrapper-side (free, XLA) time-major transform + zero batch padding;
    # padded rows produce discarded outputs and never affect real rows.
    x_tm = jnp.transpose(x.astype(jnp.float32), (1, 0, 2))               # (T, B, I)
    if Bp != B:
        x_tm = jnp.pad(x_tm, ((0, 0), (0, Bp - B), (0, 0)))

    # VMEM scaling guard: v7x has 64 MiB VMEM (scoped default ~32 MiB) vs
    # 128 MiB on v5e/v6e. Per-tile residents: x block (double-buffered),
    # x_proj scratch, weights (double-buffered), out block. Shrink batch_tile
    # or chunk T via the x BlockSpec index_map before this trips.
    vmem_est = 4 * (2 * T * Bt * I + T * Bt * G4
                    + 2 * (I * G4 + Hp * G4 + G4 + Hp + 1) + 2 * Bt)
    assert vmem_est < 24 * 1024 * 1024, (
        f"per-tile VMEM estimate {vmem_est} bytes too large: "
        "reduce batch_tile or chunk T")

    out = pl.pallas_call(
        _lstm_forecast_kernel,
        out_shape=jax.ShapeDtypeStruct((Bp, O), jnp.float32),
        grid_spec=pltpu.PrefetchScalarGridSpec(
            num_scalar_prefetch=0,
            grid=(n_tiles,),
            in_specs=[
                # x streams one batch tile per grid step (time-major).
                pl.BlockSpec((T, Bt, I), lambda b: (0, b, 0)),
                # Weights/bias are constant along the batch axis -> DMA'd once
                # and VMEM-resident for the whole grid.
                pl.BlockSpec((I, G4), lambda b: (0, 0)),      # W_ih (padded)
                pl.BlockSpec((Hp, G4), lambda b: (0, 0)),     # W_hh (padded)
                pl.BlockSpec((1, G4), lambda b: (0, 0)),      # bias (padded)
                pl.BlockSpec((1, Hp), lambda b: (0, 0)),      # W_out row
                pl.BlockSpec((1, 1), lambda b: (0, 0)),       # b_out
            ],
            out_specs=pl.BlockSpec((Bt, O), lambda b: (b, 0)),
            scratch_shapes=[pltpu.VMEM((T, Bt, G4), jnp.float32)],
        ),
        compiler_params=pltpu.CompilerParams(
            dimension_semantics=("parallel",)),
    )(x_tm, wih_p, whh_p, b_p, wout_p, bout_p)

    return out[:B, 0]                        # drop batch padding + squeeze(-1)


def init_params(key, input_size, hidden_size, output_size):
    """Deterministic synthetic LSTM + Linear parameters (xavier-ish scaling).
    Gate order [i, f, g, o], combined bias = b_ih + b_hh (PyTorch semantics).
    (Real PyTorch weights arrive as (4H, I)/(4H, H) and must be transposed.)"""
    k1, k2, k3, k4, k5, k6 = jax.random.split(key, 6)
    s_ih = (6.0 / (input_size + 4 * hidden_size)) ** 0.5
    s_hh = (6.0 / (hidden_size + 4 * hidden_size)) ** 0.5
    s_o = (6.0 / (hidden_size + output_size)) ** 0.5
    wih = jax.random.uniform(k1, (input_size, 4 * hidden_size),
                             jnp.float32, -s_ih, s_ih)
    whh = jax.random.uniform(k2, (hidden_size, 4 * hidden_size),
                             jnp.float32, -s_hh, s_hh)
    b_ih = jax.random.uniform(k3, (1, 4 * hidden_size), jnp.float32, -0.1, 0.1)
    b_hh = jax.random.uniform(k4, (1, 4 * hidden_size), jnp.float32, -0.1, 0.1)
    bias = b_ih + b_hh
    wout = jax.random.uniform(k5, (hidden_size, output_size),
                              jnp.float32, -s_o, s_o)
    bout = jax.random.uniform(k6, (1, output_size), jnp.float32, -0.1, 0.1)
    return wih, whh, bias, wout, bout


def reference_forward(x, params, hidden_size):
    """Pure-JAX reference LSTM (unpadded weights) for a sanity check."""
    wih, whh, bias, wout, bout = params
    B, T, I = x.shape
    H = hidden_size

    def cell(carry, x_t):
        h, c = carry
        g = x_t @ wih + h @ whh + bias[0]
        i = jax.nn.sigmoid(g[:, 0 * H:1 * H])
        f = jax.nn.sigmoid(g[:, 1 * H:2 * H])
        gg = jnp.tanh(g[:, 2 * H:3 * H])
        o = jax.nn.sigmoid(g[:, 3 * H:4 * H])
        c = f * c + i * gg
        h = o * jnp.tanh(c)
        return (h, c), None

    h0 = jnp.zeros((B, H), jnp.float32)
    (h, _), _ = lax.scan(cell, (h0, h0), jnp.transpose(x, (1, 0, 2)))
    return (h @ wout + bout[0])[:, 0]


if __name__ == "__main__":
    # Small shapes consistent with the module's forward:
    # batch=2, seq=8, input_size=4, hidden_size=32, output_size=1.
    B, T, I, H, O = 2, 8, 4, 32, 1

    key = jax.random.PRNGKey(0)
    kx, kp = jax.random.split(key)
    x = jax.random.normal(kx, (B, T, I), jnp.float32)
    params = init_params(kp, I, H, O)

    out = forecast_model_forward(x, params, hidden_size=H)
    out = jax.block_until_ready(out)

    ref = reference_forward(x, params, H)
    assert out.shape == (B,), out.shape
    assert jnp.allclose(out, ref, atol=1e-4, rtol=1e-4), (out, ref)

    # TODO(synk): the conditional-label embedding path (get_embeddings /
    # cond_emb, hidden_state != None) and train-mode dropout are not part of
    # this eval-mode forward(x) and are not implemented.
    print("KERNEL_OK")
</pallas_src>

<mosaic_0001>
module attributes {stable_mosaic.version = 11 : i64} {
  func.func @_lstm_forecast_kernel(%arg0: i32, %arg1: memref<8x8x4xf32, #tpu.memory_space<vmem>>, %arg2: memref<4x512xf32, #tpu.memory_space<vmem>>, %arg3: memref<128x512xf32, #tpu.memory_space<vmem>>, %arg4: memref<1x512xf32, #tpu.memory_space<vmem>>, %arg5: memref<1x128xf32, #tpu.memory_space<vmem>>, %arg6: memref<1x1xf32, #tpu.memory_space<vmem>>, %arg7: memref<8x1xf32, #tpu.memory_space<vmem>>, %arg8: memref<8x8x512xf32, #tpu.memory_space<vmem>>) attributes {dimension_semantics = [#tpu.dimension_semantics<parallel>], iteration_bounds = array<i64: 1>, scalar_prefetch = 0 : i64, scratch_operands = 1 : i64, tpu.core_type = #tpu.core_type<tc>, window_params = [{transform_indices = @transform_0, window_bounds = array<i64: 8, 8, 4>}, {pipeline_mode = #tpu.pipeline_mode<synchronous>, transform_indices = @transform_1, window_bounds = array<i64: 4, 512>}, {pipeline_mode = #tpu.pipeline_mode<synchronous>, transform_indices = @transform_2, window_bounds = array<i64: 128, 512>}, {pipeline_mode = #tpu.pipeline_mode<synchronous>, transform_indices = @transform_3, window_bounds = array<i64: 1, 512>}, {pipeline_mode = #tpu.pipeline_mode<synchronous>, transform_indices = @transform_4, window_bounds = array<i64: 1, 128>}, {pipeline_mode = #tpu.pipeline_mode<synchronous>, transform_indices = @transform_5, window_bounds = array<i64: 1, 1>}, {transform_indices = @transform_6, window_bounds = array<i64: 8, 1>}]} {
    %c0 = arith.constant 0 : index
    %c0_0 = arith.constant 0 : index
    %c0_1 = arith.constant 0 : index
    %0 = vector.load %arg1[%c0, %c0_0, %c0_1] : memref<8x8x4xf32, #tpu.memory_space<vmem>>, vector<8x8x4xf32>
    %1 = vector.shape_cast %0 : vector<8x8x4xf32> to vector<64x4xf32>
    %c0_2 = arith.constant 0 : index
    %c0_3 = arith.constant 0 : index
    %2 = vector.load %arg2[%c0_2, %c0_3] : memref<4x512xf32, #tpu.memory_space<vmem>>, vector<4x512xf32>
    %cst = arith.constant dense<0.000000e+00> : vector<64x512xf32>
    %3 = tpu.matmul %1, %2, %cst {dimension_numbers = #tpu.dot_dimension_numbers<[1], [0], [0], [1], [0, 0, 1, 1], [], []>} : vector<64x4xf32>, vector<4x512xf32>, vector<64x512xf32> -> vector<64x512xf32>
    %c0_4 = arith.constant 0 : index
    %c0_5 = arith.constant 0 : index
    %4 = vector.load %arg4[%c0_4, %c0_5] : memref<1x512xf32, #tpu.memory_space<vmem>>, vector<1x512xf32>
    %5 = vector.broadcast %4 : vector<1x512xf32> to vector<64x512xf32>
    %6 = arith.addf %3, %5 : vector<64x512xf32>
    %7 = vector.shape_cast %6 : vector<64x512xf32> to vector<8x8x512xf32>
    %c0_6 = arith.constant 0 : index
    %c0_7 = arith.constant 0 : index
    %c0_8 = arith.constant 0 : index
    %8 = vector.load %arg8[%c0_6, %c0_7, %c0_8] : memref<8x8x512xf32, #tpu.memory_space<vmem>>, vector<8x8x512xf32>
    tpu.vector_store %arg8[%c0_6, %c0_7, %c0_8], %7 {strides = array<i32>} : memref<8x8x512xf32, #tpu.memory_space<vmem>>, vector<8x8x512xf32>,
    %cst_9 = arith.constant 0.000000e+00 : f32
    %9 = vector.broadcast %cst_9 : f32 to vector<8x128xf32>
    %cst_10 = arith.constant 0.000000e+00 : f32
    %10 = vector.broadcast %cst_10 : f32 to vector<8x128xf32>
    %c0_11 = arith.constant 0 : index
    %c0_12 = arith.constant 0 : index
    %c0_13 = arith.constant 0 : index
    %11 = vector.load %arg8[%c0_11, %c0_12, %c0_13] : memref<8x8x512xf32, #tpu.memory_space<vmem>>, vector<1x8x512xf32>
    %12 = vector.shape_cast %11 : vector<1x8x512xf32> to vector<8x512xf32>
    %c0_14 = arith.constant 0 : index
    %c0_15 = arith.constant 0 : index
    %13 = vector.load %arg3[%c0_14, %c0_15] : memref<128x512xf32, #tpu.memory_space<vmem>>, vector<128x512xf32>
    %cst_16 = arith.constant dense<0.000000e+00> : vector<8x512xf32>
    %14 = tpu.matmul %9, %13, %cst_16 {dimension_numbers = #tpu.dot_dimension_numbers<[1], [0], [0], [1], [0, 0, 1, 1], [], []>} : vector<8x128xf32>, vector<128x512xf32>, vector<8x512xf32> -> vector<8x512xf32>
    %15 = arith.addf %12, %14 : vector<8x512xf32>
    %16 = vector.extract_strided_slice %15 {offsets = [0, 0], sizes = [8, 128], strides = [1, 1]} : vector<8x512xf32> to vector<8x128xf32>
    %17 = arith.negf %16 : vector<8x128xf32>
    %18 = math.exp %17 : vector<8x128xf32>
    %cst_17 = arith.constant 1.000000e+00 : f32
    %19 = vector.broadcast %cst_17 : f32 to vector<8x128xf32>
    %20 = arith.addf %19, %18 : vector<8x128xf32>
    %21 = arith.divf %19, %20 : vector<8x128xf32>
    %22 = vector.extract_strided_slice %15 {offsets = [0, 128], sizes = [8, 128], strides = [1, 1]} : vector<8x512xf32> to vector<8x128xf32>
    %23 = arith.negf %22 : vector<8x128xf32>
    %24 = math.exp %23 : vector<8x128xf32>
    %cst_18 = arith.constant 1.000000e+00 : f32
    %25 = vector.broadcast %cst_18 : f32 to vector<8x128xf32>
    %26 = arith.addf %25, %24 : vector<8x128xf32>
    %27 = arith.divf %25, %26 : vector<8x128xf32>
    %28 = vector.extract_strided_slice %15 {offsets = [0, 256], sizes = [8, 128], strides = [1, 1]} : vector<8x512xf32> to vector<8x128xf32>
    %29 = math.tanh %28 : vector<8x128xf32>
    %30 = vector.extract_strided_slice %15 {offsets = [0, 384], sizes = [8, 128], strides = [1, 1]} : vector<8x512xf32> to vector<8x128xf32>
    %31 = arith.negf %30 : vector<8x128xf32>
    %32 = math.exp %31 : vector<8x128xf32>
    %cst_19 = arith.constant 1.000000e+00 : f32
    %33 = vector.broadcast %cst_19 : f32 to vector<8x128xf32>
    %34 = arith.addf %33, %32 : vector<8x128xf32>
    %35 = arith.divf %33, %34 : vector<8x128xf32>
    %36 = arith.mulf %27, %10 : vector<8x128xf32>
    %37 = arith.mulf %21, %29 : vector<8x128xf32>
    %38 = arith.addf %36, %37 : vector<8x128xf32>
    %39 = math.tanh %38 : vector<8x128xf32>
    %40 = arith.mulf %35, %39 : vector<8x128xf32>
    %c1 = arith.constant 1 : index
    %c0_20 = arith.constant 0 : index
    %c0_21 = arith.constant 0 : index
    %41 = vector.load %arg8[%c1, %c0_20, %c0_21] : memref<8x8x512xf32, #tpu.memory_space<vmem>>, vector<1x8x512xf32>
    %42 = vector.shape_cast %41 : vector<1x8x512xf32> to vector<8x512xf32>
    %c0_22 = arith.constant 0 : index
    %c0_23 = arith.constant 0 : index
    %43 = vector.load %arg3[%c0_22, %c0_23] : memref<128x512xf32, #tpu.memory_space<vmem>>, vector<128x512xf32>
    %cst_24 = arith.constant dense<0.000000e+00> : vector<8x512xf32>
    %44 = tpu.matmul %40, %43, %cst_24 {dimension_numbers = #tpu.dot_dimension_numbers<[1], [0], [0], [1], [0, 0, 1, 1], [], []>} : vector<8x128xf32>, vector<128x512xf32>, vector<8x512xf32> -> vector<8x512xf32>
    %45 = arith.addf %42, %44 : vector<8x512xf32>
    %46 = vector.extract_strided_slice %45 {offsets = [0, 0], sizes = [8, 128], strides = [1, 1]} : vector<8x512xf32> to vector<8x128xf32>
    %47 = arith.negf %46 : vector<8x128xf32>
    %48 = math.exp %47 : vector<8x128xf32>
    %cst_25 = arith.constant 1.000000e+00 : f32
    %49 = vector.broadcast %cst_25 : f32 to vector<8x128xf32>
    %50 = arith.addf %49, %48 : vector<8x128xf32>
    %51 = arith.divf %49, %50 : vector<8x128xf32>
    %52 = vector.extract_strided_slice %45 {offsets = [0, 128], sizes = [8, 128], strides = [1, 1]} : vector<8x512xf32> to vector<8x128xf32>
    %53 = arith.negf %52 : vector<8x128xf32>
    %54 = math.exp %53 : vector<8x128xf32>
    %cst_26 = arith.constant 1.000000e+00 : f32
    %55 = vector.broadcast %cst_26 : f32 to vector<8x128xf32>
    %56 = arith.addf %55, %54 : vector<8x128xf32>
    %57 = arith.divf %55, %56 : vector<8x128xf32>
    %58 = vector.extract_strided_slice %45 {offsets = [0, 256], sizes = [8, 128], strides = [1, 1]} : vector<8x512xf32> to vector<8x128xf32>
    %59 = math.tanh %58 : vector<8x128xf32>
    %60 = vector.extract_strided_slice %45 {offsets = [0, 384], sizes = [8, 128], strides = [1, 1]} : vector<8x512xf32> to vector<8x128xf32>
    %61 = arith.negf %60 : vector<8x128xf32>
    %62 = math.exp %61 : vector<8x128xf32>
    %cst_27 = arith.constant 1.000000e+00 : f32
    %63 = vector.broadcast %cst_27 : f32 to vector<8x128xf32>
    %64 = arith.addf %63, %62 : vector<8x128xf32>
    %65 = arith.divf %63, %64 : vector<8x128xf32>
    %66 = arith.mulf %57, %38 : vector<8x128xf32>
    %67 = arith.mulf %51, %59 : vector<8x128xf32>
    %68 = arith.addf %66, %67 : vector<8x128xf32>
    %69 = math.tanh %68 : vector<8x128xf32>
    %70 = arith.mulf %65, %69 : vector<8x128xf32>
    %c2 = arith.constant 2 : index
    %c0_28 = arith.constant 0 : index
    %c0_29 = arith.constant 0 : index
    %71 = vector.load %arg8[%c2, %c0_28, %c0_29] : memref<8x8x512xf32, #tpu.memory_space<vmem>>, vector<1x8x512xf32>
    %72 = vector.shape_cast %71 : vector<1x8x512xf32> to vector<8x512xf32>
    %c0_30 = arith.constant 0 : index
    %c0_31 = arith.constant 0 : index
    %73 = vector.load %arg3[%c0_30, %c0_31] : memref<128x512xf32, #tpu.memory_space<vmem>>, vector<128x512xf32>
    %cst_32 = arith.constant dense<0.000000e+00> : vector<8x512xf32>
    %74 = tpu.matmul %70, %73, %cst_32 {dimension_numbers = #tpu.dot_dimension_numbers<[1], [0], [0], [1], [0, 0, 1, 1], [], []>} : vector<8x128xf32>, vector<128x512xf32>, vector<8x512xf32> -> vector<8x512xf32>
    %75 = arith.addf %72, %74 : vector<8x512xf32>
    %76 = vector.extract_strided_slice %75 {offsets = [0, 0], sizes = [8, 128], strides = [1, 1]} : vector<8x512xf32> to vector<8x128xf32>
    %77 = arith.negf %76 : vector<8x128xf32>
    %78 = math.exp %77 : vector<8x128xf32>
    %cst_33 = arith.constant 1.000000e+00 : f32
    %79 = vector.broadcast %cst_33 : f32 to vector<8x128xf32>
    %80 = arith.addf %79, %78 : vector<8x128xf32>
    %81 = arith.divf %79, %80 : vector<8x128xf32>
    %82 = vector.extract_strided_slice %75 {offsets = [0, 128], sizes = [8, 128], strides = [1, 1]} : vector<8x512xf32> to vector<8x128xf32>
    %83 = arith.negf %82 : vector<8x128xf32>
    %84 = math.exp %83 : vector<8x128xf32>
    %cst_34 = arith.constant 1.000000e+00 : f32
    %85 = vector.broadcast %cst_34 : f32 to vector<8x128xf32>
    %86 = arith.addf %85, %84 : vector<8x128xf32>
    %87 = arith.divf %85, %86 : vector<8x128xf32>
    %88 = vector.extract_strided_slice %75 {offsets = [0, 256], sizes = [8, 128], strides = [1, 1]} : vector<8x512xf32> to vector<8x128xf32>
    %89 = math.tanh %88 : vector<8x128xf32>
    %90 = vector.extract_strided_slice %75 {offsets = [0, 384], sizes = [8, 128], strides = [1, 1]} : vector<8x512xf32> to vector<8x128xf32>
    %91 = arith.negf %90 : vector<8x128xf32>
    %92 = math.exp %91 : vector<8x128xf32>
    %cst_35 = arith.constant 1.000000e+00 : f32
    %93 = vector.broadcast %cst_35 : f32 to vector<8x128xf32>
    %94 = arith.addf %93, %92 : vector<8x128xf32>
    %95 = arith.divf %93, %94 : vector<8x128xf32>
    %96 = arith.mulf %87, %68 : vector<8x128xf32>
    %97 = arith.mulf %81, %89 : vector<8x128xf32>
    %98 = arith.addf %96, %97 : vector<8x128xf32>
    %99 = math.tanh %98 : vector<8x128xf32>
    %100 = arith.mulf %95, %99 : vector<8x128xf32>
    %c3 = arith.constant 3 : index
    %c0_36 = arith.constant 0 : index
    %c0_37 = arith.constant 0 : index
    %101 = vector.load %arg8[%c3, %c0_36, %c0_37] : memref<8x8x512xf32, #tpu.memory_space<vmem>>, vector<1x8x512xf32>
    %102 = vector.shape_cast %101 : vector<1x8x512xf32> to vector<8x512xf32>
    %c0_38 = arith.constant 0 : index
    %c0_39 = arith.constant 0 : index
    %103 = vector.load %arg3[%c0_38, %c0_39] : memref<128x512xf32, #tpu.memory_space<vmem>>, vector<128x512xf32>
    %cst_40 = arith.constant dense<0.000000e+00> : vector<8x512xf32>
    %104 = tpu.matmul %100, %103, %cst_40 {dimension_numbers = #tpu.dot_dimension_numbers<[1], [0], [0], [1], [0, 0, 1, 1], [], []>} : vector<8x128xf32>, vector<128x512xf32>, vector<8x512xf32> -> vector<8x512xf32>
    %105 = arith.addf %102, %104 : vector<8x512xf32>
    %106 = vector.extract_strided_slice %105 {offsets = [0, 0], sizes = [8, 128], strides = [1, 1]} : vector<8x512xf32> to vector<8x128xf32>
    %107 = arith.negf %106 : vector<8x128xf32>
    %108 = math.exp %107 : vector<8x128xf32>
    %cst_41 = arith.constant 1.000000e+00 : f32
    %109 = vector.broadcast %cst_41 : f32 to vector<8x128xf32>
    %110 = arith.addf %109, %108 : vector<8x128xf32>
    %111 = arith.divf %109, %110 : vector<8x128xf32>
    %112 = vector.extract_strided_slice %105 {offsets = [0, 128], sizes = [8, 128], strides = [1, 1]} : vector<8x512xf32> to vector<8x128xf32>
    %113 = arith.negf %112 : vector<8x128xf32>
    %114 = math.exp %113 : vector<8x128xf32>
    %cst_42 = arith.constant 1.000000e+00 : f32
    %115 = vector.broadcast %cst_42 : f32 to vector<8x128xf32>
    %116 = arith.addf %115, %114 : vector<8x128xf32>
    %117 = arith.divf %115, %116 : vector<8x128xf32>
    %118 = vector.extract_strided_slice %105 {offsets = [0, 256], sizes = [8, 128], strides = [1, 1]} : vector<8x512xf32> to vector<8x128xf32>
    %119 = math.tanh %118 : vector<8x128xf32>
    %120 = vector.extract_strided_slice %105 {offsets = [0, 384], sizes = [8, 128], strides = [1, 1]} : vector<8x512xf32> to vector<8x128xf32>
    %121 = arith.negf %120 : vector<8x128xf32>
    %122 = math.exp %121 : vector<8x128xf32>
    %cst_43 = arith.constant 1.000000e+00 : f32
    %123 = vector.broadcast %cst_43 : f32 to vector<8x128xf32>
    %124 = arith.addf %123, %122 : vector<8x128xf32>
    %125 = arith.divf %123, %124 : vector<8x128xf32>
    %126 = arith.mulf %117, %98 : vector<8x128xf32>
    %127 = arith.mulf %111, %119 : vector<8x128xf32>
    %128 = arith.addf %126, %127 : vector<8x128xf32>
    %129 = math.tanh %128 : vector<8x128xf32>
    %130 = arith.mulf %125, %129 : vector<8x128xf32>
    %c4 = arith.constant 4 : index
    %c0_44 = arith.constant 0 : index
    %c0_45 = arith.constant 0 : index
    %131 = vector.load %arg8[%c4, %c0_44, %c0_45] : memref<8x8x512xf32, #tpu.memory_space<vmem>>, vector<1x8x512xf32>
    %132 = vector.shape_cast %131 : vector<1x8x512xf32> to vector<8x512xf32>
    %c0_46 = arith.constant 0 : index
    %c0_47 = arith.constant 0 : index
    %133 = vector.load %arg3[%c0_46, %c0_47] : memref<128x512xf32, #tpu.memory_space<vmem>>, vector<128x512xf32>
    %cst_48 = arith.constant dense<0.000000e+00> : vector<8x512xf32>
    %134 = tpu.matmul %130, %133, %cst_48 {dimension_numbers = #tpu.dot_dimension_numbers<[1], [0], [0], [1], [0, 0, 1, 1], [], []>} : vector<8x128xf32>, vector<128x512xf32>, vector<8x512xf32> -> vector<8x512xf32>
    %135 = arith.addf %132, %134 : vector<8x512xf32>
    %136 = vector.extract_strided_slice %135 {offsets = [0, 0], sizes = [8, 128], strides = [1, 1]} : vector<8x512xf32> to vector<8x128xf32>
    %137 = arith.negf %136 : vector<8x128xf32>
    %138 = math.exp %137 : vector<8x128xf32>
    %cst_49 = arith.constant 1.000000e+00 : f32
    %139 = vector.broadcast %cst_49 : f32 to vector<8x128xf32>
    %140 = arith.addf %139, %138 : vector<8x128xf32>
    %141 = arith.divf %139, %140 : vector<8x128xf32>
    %142 = vector.extract_strided_slice %135 {offsets = [0, 128], sizes = [8, 128], strides = [1, 1]} : vector<8x512xf32> to vector<8x128xf32>
    %143 = arith.negf %142 : vector<8x128xf32>
    %144 = math.exp %143 : vector<8x128xf32>
    %cst_50 = arith.constant 1.000000e+00 : f32
    %145 = vector.broadcast %cst_50 : f32 to vector<8x128xf32>
    %146 = arith.addf %145, %144 : vector<8x128xf32>
    %147 = arith.divf %145, %146 : vector<8x128xf32>
    %148 = vector.extract_strided_slice %135 {offsets = [0, 256], sizes = [8, 128], strides = [1, 1]} : vector<8x512xf32> to vector<8x128xf32>
    %149 = math.tanh %148 : vector<8x128xf32>
    %150 = vector.extract_strided_slice %135 {offsets = [0, 384], sizes = [8, 128], strides = [1, 1]} : vector<8x512xf32> to vector<8x128xf32>
    %151 = arith.negf %150 : vector<8x128xf32>
    %152 = math.exp %151 : vector<8x128xf32>
    %cst_51 = arith.constant 1.000000e+00 : f32
    %153 = vector.broadcast %cst_51 : f32 to vector<8x128xf32>
    %154 = arith.addf %153, %152 : vector<8x128xf32>
    %155 = arith.divf %153, %154 : vector<8x128xf32>
    %156 = arith.mulf %147, %128 : vector<8x128xf32>
    %157 = arith.mulf %141, %149 : vector<8x128xf32>
    %158 = arith.addf %156, %157 : vector<8x128xf32>
    %159 = math.tanh %158 : vector<8x128xf32>
    %160 = arith.mulf %155, %159 : vector<8x128xf32>
    %c5 = arith.constant 5 : index
    %c0_52 = arith.constant 0 : index
    %c0_53 = arith.constant 0 : index
    %161 = vector.load %arg8[%c5, %c0_52, %c0_53] : memref<8x8x512xf32, #tpu.memory_space<vmem>>, vector<1x8x512xf32>
    %162 = vector.shape_cast %161 : vector<1x8x512xf32> to vector<8x512xf32>
    %c0_54 = arith.constant 0 : index
    %c0_55 = arith.constant 0 : index
    %163 = vector.load %arg3[%c0_54, %c0_55] : memref<128x512xf32, #tpu.memory_space<vmem>>, vector<128x512xf32>
    %cst_56 = arith.constant dense<0.000000e+00> : vector<8x512xf32>
    %164 = tpu.matmul %160, %163, %cst_56 {dimension_numbers = #tpu.dot_dimension_numbers<[1], [0], [0], [1], [0, 0, 1, 1], [], []>} : vector<8x128xf32>, vector<128x512xf32>, vector<8x512xf32> -> vector<8x512xf32>
    %165 = arith.addf %162, %164 : vector<8x512xf32>
    %166 = vector.extract_strided_slice %165 {offsets = [0, 0], sizes = [8, 128], strides = [1, 1]} : vector<8x512xf32> to vector<8x128xf32>
    %167 = arith.negf %166 : vector<8x128xf32>
    %168 = math.exp %167 : vector<8x128xf32>
    %cst_57 = arith.constant 1.000000e+00 : f32
    %169 = vector.broadcast %cst_57 : f32 to vector<8x128xf32>
    %170 = arith.addf %169, %168 : vector<8x128xf32>
    %171 = arith.divf %169, %170 : vector<8x128xf32>
    %172 = vector.extract_strided_slice %165 {offsets = [0, 128], sizes = [8, 128], strides = [1, 1]} : vector<8x512xf32> to vector<8x128xf32>
    %173 = arith.negf %172 : vector<8x128xf32>
    %174 = math.exp %173 : vector<8x128xf32>
    %cst_58 = arith.constant 1.000000e+00 : f32
    %175 = vector.broadcast %cst_58 : f32 to vector<8x128xf32>
    %176 = arith.addf %175, %174 : vector<8x128xf32>
    %177 = arith.divf %175, %176 : vector<8x128xf32>
    %178 = vector.extract_strided_slice %165 {offsets = [0, 256], sizes = [8, 128], strides = [1, 1]} : vector<8x512xf32> to vector<8x128xf32>
    %179 = math.tanh %178 : vector<8x128xf32>
    %180 = vector.extract_strided_slice %165 {offsets = [0, 384], sizes = [8, 128], strides = [1, 1]} : vector<8x512xf32> to vector<8x128xf32>
    %181 = arith.negf %180 : vector<8x128xf32>
    %182 = math.exp %181 : vector<8x128xf32>
    %cst_59 = arith.constant 1.000000e+00 : f32
    %183 = vector.broadcast %cst_59 : f32 to vector<8x128xf32>
    %184 = arith.addf %183, %182 : vector<8x128xf32>
    %185 = arith.divf %183, %184 : vector<8x128xf32>
    %186 = arith.mulf %177, %158 : vector<8x128xf32>
    %187 = arith.mulf %171, %179 : vector<8x128xf32>
    %188 = arith.addf %186, %187 : vector<8x128xf32>
    %189 = math.tanh %188 : vector<8x128xf32>
    %190 = arith.mulf %185, %189 : vector<8x128xf32>
    %c6 = arith.constant 6 : index
    %c0_60 = arith.constant 0 : index
    %c0_61 = arith.constant 0 : index
    %191 = vector.load %arg8[%c6, %c0_60, %c0_61] : memref<8x8x512xf32, #tpu.memory_space<vmem>>, vector<1x8x512xf32>
    %192 = vector.shape_cast %191 : vector<1x8x512xf32> to vector<8x512xf32>
    %c0_62 = arith.constant 0 : index
    %c0_63 = arith.constant 0 : index
    %193 = vector.load %arg3[%c0_62, %c0_63] : memref<128x512xf32, #tpu.memory_space<vmem>>, vector<128x512xf32>
    %cst_64 = arith.constant dense<0.000000e+00> : vector<8x512xf32>
    %194 = tpu.matmul %190, %193, %cst_64 {dimension_numbers = #tpu.dot_dimension_numbers<[1], [0], [0], [1], [0, 0, 1, 1], [], []>} : vector<8x128xf32>, vector<128x512xf32>, vector<8x512xf32> -> vector<8x512xf32>
    %195 = arith.addf %192, %194 : vector<8x512xf32>
    %196 = vector.extract_strided_slice %195 {offsets = [0, 0], sizes = [8, 128], strides = [1, 1]} : vector<8x512xf32> to vector<8x128xf32>
    %197 = arith.negf %196 : vector<8x128xf32>
    %198 = math.exp %197 : vector<8x128xf32>
    %cst_65 = arith.constant 1.000000e+00 : f32
    %199 = vector.broadcast %cst_65 : f32 to vector<8x128xf32>
    %200 = arith.addf %199, %198 : vector<8x128xf32>
    %201 = arith.divf %199, %200 : vector<8x128xf32>
    %202 = vector.extract_strided_slice %195 {offsets = [0, 128], sizes = [8, 128], strides = [1, 1]} : vector<8x512xf32> to vector<8x128xf32>
    %203 = arith.negf %202 : vector<8x128xf32>
    %204 = math.exp %203 : vector<8x128xf32>
    %cst_66 = arith.constant 1.000000e+00 : f32
    %205 = vector.broadcast %cst_66 : f32 to vector<8x128xf32>
    %206 = arith.addf %205, %204 : vector<8x128xf32>
    %207 = arith.divf %205, %206 : vector<8x128xf32>
    %208 = vector.extract_strided_slice %195 {offsets = [0, 256], sizes = [8, 128], strides = [1, 1]} : vector<8x512xf32> to vector<8x128xf32>
    %209 = math.tanh %208 : vector<8x128xf32>
    %210 = vector.extract_strided_slice %195 {offsets = [0, 384], sizes = [8, 128], strides = [1, 1]} : vector<8x512xf32> to vector<8x128xf32>
    %211 = arith.negf %210 : vector<8x128xf32>
    %212 = math.exp %211 : vector<8x128xf32>
    %cst_67 = arith.constant 1.000000e+00 : f32
    %213 = vector.broadcast %cst_67 : f32 to vector<8x128xf32>
    %214 = arith.addf %213, %212 : vector<8x128xf32>
    %215 = arith.divf %213, %214 : vector<8x128xf32>
    %216 = arith.mulf %207, %188 : vector<8x128xf32>
    %217 = arith.mulf %201, %209 : vector<8x128xf32>
    %218 = arith.addf %216, %217 : vector<8x128xf32>
    %219 = math.tanh %218 : vector<8x128xf32>
    %220 = arith.mulf %215, %219 : vector<8x128xf32>
    %c7 = arith.constant 7 : index
    %c0_68 = arith.constant 0 : index
    %c0_69 = arith.constant 0 : index
    %221 = vector.load %arg8[%c7, %c0_68, %c0_69] : memref<8x8x512xf32, #tpu.memory_space<vmem>>, vector<1x8x512xf32>
    %222 = vector.shape_cast %221 : vector<1x8x512xf32> to vector<8x512xf32>
    %c0_70 = arith.constant 0 : index
    %c0_71 = arith.constant 0 : index
    %223 = vector.load %arg3[%c0_70, %c0_71] : memref<128x512xf32, #tpu.memory_space<vmem>>, vector<128x512xf32>
    %cst_72 = arith.constant dense<0.000000e+00> : vector<8x512xf32>
    %224 = tpu.matmul %220, %223, %cst_72 {dimension_numbers = #tpu.dot_dimension_numbers<[1], [0], [0], [1], [0, 0, 1, 1], [], []>} : vector<8x128xf32>, vector<128x512xf32>, vector<8x512xf32> -> vector<8x512xf32>
    %225 = arith.addf %222, %224 : vector<8x512xf32>
    %226 = vector.extract_strided_slice %225 {offsets = [0, 0], sizes = [8, 128], strides = [1, 1]} : vector<8x512xf32> to vector<8x128xf32>
    %227 = arith.negf %226 : vector<8x128xf32>
    %228 = math.exp %227 : vector<8x128xf32>
    %cst_73 = arith.constant 1.000000e+00 : f32
    %229 = vector.broadcast %cst_73 : f32 to vector<8x128xf32>
    %230 = arith.addf %229, %228 : vector<8x128xf32>
    %231 = arith.divf %229, %230 : vector<8x128xf32>
    %232 = vector.extract_strided_slice %225 {offsets = [0, 128], sizes = [8, 128], strides = [1, 1]} : vector<8x512xf32> to vector<8x128xf32>
    %233 = arith.negf %232 : vector<8x128xf32>
    %234 = math.exp %233 : vector<8x128xf32>
    %cst_74 = arith.constant 1.000000e+00 : f32
    %235 = vector.broadcast %cst_74 : f32 to vector<8x128xf32>
    %236 = arith.addf %235, %234 : vector<8x128xf32>
    %237 = arith.divf %235, %236 : vector<8x128xf32>
    %238 = vector.extract_strided_slice %225 {offsets = [0, 256], sizes = [8, 128], strides = [1, 1]} : vector<8x512xf32> to vector<8x128xf32>
    %239 = math.tanh %238 : vector<8x128xf32>
    %240 = vector.extract_strided_slice %225 {offsets = [0, 384], sizes = [8, 128], strides = [1, 1]} : vector<8x512xf32> to vector<8x128xf32>
    %241 = arith.negf %240 : vector<8x128xf32>
    %242 = math.exp %241 : vector<8x128xf32>
    %cst_75 = arith.constant 1.000000e+00 : f32
    %243 = vector.broadcast %cst_75 : f32 to vector<8x128xf32>
    %244 = arith.addf %243, %242 : vector<8x128xf32>
    %245 = arith.divf %243, %244 : vector<8x128xf32>
    %246 = arith.mulf %237, %218 : vector<8x128xf32>
    %247 = arith.mulf %231, %239 : vector<8x128xf32>
    %248 = arith.addf %246, %247 : vector<8x128xf32>
    %249 = math.tanh %248 : vector<8x128xf32>
    %250 = arith.mulf %245, %249 : vector<8x128xf32>
    %c0_76 = arith.constant 0 : index
    %c0_77 = arith.constant 0 : index
    %251 = vector.load %arg5[%c0_76, %c0_77] : memref<1x128xf32, #tpu.memory_space<vmem>>, vector<1x128xf32>
    %252 = vector.broadcast %251 : vector<1x128xf32> to vector<8x128xf32>
    %253 = arith.mulf %250, %252 : vector<8x128xf32>
    %cst_78 = arith.constant dense<0.000000e+00> : vector<8xf32>
    %254 = vector.multi_reduction <add>, %253, %cst_78 [1] : vector<8x128xf32> to vector<8xf32>
    %255 = vector.shape_cast %254 : vector<8xf32> to vector<8x1xf32>
    %c0_79 = arith.constant 0 : index
    %c0_80 = arith.constant 0 : index
    %256 = vector.load %arg6[%c0_79, %c0_80] : memref<1x1xf32, #tpu.memory_space<vmem>>, vector<1x1xf32>
    %257 = vector.broadcast %256 : vector<1x1xf32> to vector<8x1xf32>
    %258 = arith.addf %255, %257 : vector<8x1xf32>
    %c0_81 = arith.constant 0 : index
    %c0_82 = arith.constant 0 : index
    %259 = vector.load %arg7[%c0_81, %c0_82] : memref<8x1xf32, #tpu.memory_space<vmem>>, vector<8x1xf32>
    tpu.vector_store %arg7[%c0_81, %c0_82], %258 {strides = array<i32>} : memref<8x1xf32, #tpu.memory_space<vmem>>, vector<8x1xf32>,
    return
  }
  func.func @transform_0(%arg0: i32) -> (i32, i32, i32) {
    %c0_i32 = arith.constant 0 : i32
    %c0_i32_0 = arith.constant 0 : i32
    %c0_i32_1 = arith.constant 0 : i32
    return %c0_i32, %arg0, %c0_i32_0 : i32, i32, i32
  }
  func.func @transform_1(%arg0: i32) -> (i32, i32) {
    %c0_i32 = arith.constant 0 : i32
    %c0_i32_0 = arith.constant 0 : i32
    %c0_i32_1 = arith.constant 0 : i32
    return %c0_i32, %c0_i32_0 : i32, i32
  }
  func.func @transform_2(%arg0: i32) -> (i32, i32) {
    %c0_i32 = arith.constant 0 : i32
    %c0_i32_0 = arith.constant 0 : i32
    %c0_i32_1 = arith.constant 0 : i32
    return %c0_i32, %c0_i32_0 : i32, i32
  }
  func.func @transform_3(%arg0: i32) -> (i32, i32) {
    %c0_i32 = arith.constant 0 : i32
    %c0_i32_0 = arith.constant 0 : i32
    %c0_i32_1 = arith.constant 0 : i32
    return %c0_i32, %c0_i32_0 : i32, i32
  }
  func.func @transform_4(%arg0: i32) -> (i32, i32) {
    %c0_i32 = arith.constant 0 : i32
    %c0_i32_0 = arith.constant 0 : i32
    %c0_i32_1 = arith.constant 0 : i32
    return %c0_i32, %c0_i32_0 : i32, i32
  }
  func.func @transform_5(%arg0: i32) -> (i32, i32) {
    %c0_i32 = arith.constant 0 : i32
    %c0_i32_0 = arith.constant 0 : i32
    %c0_i32_1 = arith.constant 0 : i32
    return %c0_i32, %c0_i32_0 : i32, i32
  }
  func.func @transform_6(%arg0: i32) -> (i32, i32) {
    %c0_i32 = arith.constant 0 : i32
    %c0_i32_0 = arith.constant 0 : i32
    return %arg0, %c0_i32 : i32, i32
  }
}

</mosaic_0001>

<llo_original>
// kernel: tpu_custom_call.1
$region0: #{tpu_custom_call.1}
  #allocation0 [shape = 'u32[]', space=smem, size = 0x4, offset = 0x4, fixed_abs, tag = 'smem constant byte address 0x4 - core index']
  #allocation1 [shape = 'u32[72,128]{1,0:T(1,128)}', space=vmem, size = 0x9000, scoped, tag = 'internal scratch']
  #allocation2 [shape = 'f32[8,8,512]{2,1,0:T(8,128)}', space=vmem, size = 0x20000, scoped, tag = 'scratch operand']
  #allocation3 [shape = 'f32[1,1]{1,0:T(1,128)S(1)}', space=vmem, size = 0x200, scoped, tag = 'scoped memory for tpu_custom_call.1']
  %s0 = inlined_call_operand.vmem [shape: f32[8,8,4], index: 0, kind: input, shape index: {}]
  %s1 = inlined_call_operand.vmem [shape: f32[4,512], index: 1, kind: input, shape index: {}]
  %s2 = inlined_call_operand.hbm [shape: f32[128,512], index: 2, kind: input, shape index: {}]
  %s3 = inlined_call_operand.vmem [shape: f32[1,512], index: 3, kind: input, shape index: {}]
  %s4 = inlined_call_operand.vmem [shape: f32[1,128], index: 4, kind: input, shape index: {}]
  %s5 = inlined_call_operand.<no memory space> [shape: f32[1,1], index: 5, kind: input, shape index: {}]
  %s6 = inlined_call_operand.vmem [shape: f32[8,1], index: 6, kind: output, shape index: {}]
  %s7 = sld [smem:[#allocation0]]
  $region38: #{tpu_custom_call.1} parent=0
    _
  %s9 = ssub.s32 1, %s7
  %s10 = scalar_select 0, %s9, %s7
  %v11 = vstv %s5
  %12 = vst [vmem:[#allocation3] sm:$0x1] %v11
  $region1: #{tpu_custom_call.1} parent=0
    #allocation4 [shape = 'u8[262144]{0}', space=vmem, size = 0x40000, scoped, tag = 'input window, operand 2, single buffered']
    #allocation5 [shape = 's32[1]{0}', space=sflag, size = 0x4, scoped, tag = 'scoped memory for tpu_custom_call.1']
    %13 = vsyncpa [#allocation5], 0
    // Predicated region
    $region2: #{tpu_custom_call.1} parent=1 // pred_check
      _
    $region3: #{tpu_custom_call.1} parent=1 // pred_check_branch
      %15 = sbr.rel (0) target = $region5
    $region4: #{tpu_custom_call.1} parent=1 // pred_region
      _
    $region5: #{tpu_custom_call.1} parent=1 // pred_fallthru
      _
    // Predicated region
    $region6: #{tpu_custom_call.1} parent=1 // pred_check
      _
    $region7: #{tpu_custom_call.1} parent=1 // pred_check_branch
      %17 = sbr.rel (0) target = $region9
    $region8: #{tpu_custom_call.1} parent=1 // pred_region
      _
    $region9: #{tpu_custom_call.1} parent=1 // pred_fallthru
      _
    // Predicated region
    $region10: #{tpu_custom_call.1} parent=1 // pred_check
      _
    $region11: #{tpu_custom_call.1} parent=1 // pred_check_branch
      %19 = sbr.rel (0) target = $region13
    $region12: #{tpu_custom_call.1} parent=1 // pred_region
      %21 = vsyncadd [#allocation5], 0
      %s22 = sshll.u32 %s2, 4
      %s23 = int_to_ptr.hbm [resolvable:$true] %s22
      %s24 = sshll.u32 [#allocation4], 4
      %s25 = int_to_ptr.vmem [resolvable:$true] %s24
      %30 = dma.hbm_to_vmem [thread:$0]  %s23, 8192, %s25, [#allocation5], 512, 512, 32
    $region13: #{tpu_custom_call.1} parent=1 // pred_fallthru
      _
    // Predicated region
    $region14: #{tpu_custom_call.1} parent=1 // pred_check
      _
    $region15: #{tpu_custom_call.1} parent=1 // pred_check_branch
      %32 = sbr.rel (0) target = $region17
    $region16: #{tpu_custom_call.1} parent=1 // pred_region
      _
    $region17: #{tpu_custom_call.1} parent=1 // pred_fallthru
      _
    // Predicated region
    $region18: #{tpu_custom_call.1} parent=1 // pred_check
      _
    $region19: #{tpu_custom_call.1} parent=1 // pred_check_branch
      %34 = sbr.rel (0) target = $region21
    $region20: #{tpu_custom_call.1} parent=1 // pred_region
      _
    $region21: #{tpu_custom_call.1} parent=1 // pred_fallthru
      _
    // Predicated region
    $region22: #{tpu_custom_call.1} parent=1 // pred_check
      _
    $region23: #{tpu_custom_call.1} parent=1 // pred_check_branch
      %36 = sbr.rel (0) target = $region25
    $region24: #{tpu_custom_call.1} parent=1 // pred_region
      _
    $region25: #{tpu_custom_call.1} parent=1 // pred_fallthru
      _
    // Predicated region
    $region26: #{tpu_custom_call.1} parent=1 // pred_check
      _
    $region27: #{tpu_custom_call.1} parent=1 // pred_check_branch
      %38 = sbr.rel (0) target = $region29
    $region28: #{tpu_custom_call.1} parent=1 // pred_region
      %40 = dma.done [#allocation5], 8192
    $region29: #{tpu_custom_call.1} parent=1 // pred_fallthru
      _
    %v41 = vld [vmem:[%s0] sm:$0xff]
    %v42 = vld [vmem:[%s0 + $0x8] sm:$0xff]
    %v43 = vld [vmem:[%s0 + $0x10] sm:$0xff]
    %v44 = vld [vmem:[%s0 + $0x18] sm:$0xff]
    %v45 = vld [vmem:[%s0 + $0x20] sm:$0xff]
    %v46 = vld [vmem:[%s0 + $0x28] sm:$0xff]
    %v47 = vld [vmem:[%s0 + $0x30] sm:$0xff]
    %v48 = vld [vmem:[%s0 + $0x38] sm:$0xff]
    %v49 = vld [vmem:[%s1] sm:$0xff]
    %v50 = vld [vmem:[%s1 + $0x8] sm:$0xff]
    %v51 = vld [vmem:[%s3] sm:$0xf]
    %v53 = vperm.slane %v51, 0
    %v54 = vperm.slane %v51, 1
    %v55 = vperm.slane %v51, 2
    %v56 = vperm.slane %v51, 3
    %63 = vst [vmem:[#allocation1] ss:$2 sm:$0xff] %v49
    %s64 = scalar_lea.vmem [#allocation1], 16
    %65 = vst [vmem:[%s64] ss:$2 sm:$0xff] %v50
    %v66 = vld.sshfl [vmem:[#allocation1] sm:$0xff pattern:$0x75316420]
    %v67 = vld.sshfl [vmem:[#allocation1 + $0x8] sm:$0xff pattern:$0x75316420]
    %v68 = vld.sshfl [vmem:[#allocation1 + $0x10] sm:$0xff pattern:$0x75316420]
    %v69 = vld.sshfl [vmem:[#allocation1 + $0x18] sm:$0xff pattern:$0x75316420]
    %vm70 = vcmask 31744
    %v72 = vsel %vm70, %v41, 0
    %v75 = vsel %vm70, %v42, 0
    %v78 = vsel %vm70, %v43, 0
    %v81 = vsel %vm70, %v44, 0
    %v84 = vsel %vm70, %v45, 0
    %v87 = vsel %vm70, %v46, 0
    %v90 = vsel %vm70, %v47, 0
    %v93 = vsel %vm70, %v48, 0
    %vm95 = vcmask 1043456
    %v96 = vsel %vm95, %v66, 0
    %v98 = vsel %vm95, %v67, 0
    %v100 = vsel %vm95, %v68, 0
    %v102 = vsel %vm95, %v69, 0
    %104 = vmatpush.msra.mxu0 0.0
    %105 = vmatpush.msra.mxu0 0.0
    %106 = vmatpush.msra.mxu0 0.0
    %107 = vmatpush.msra.mxu0 0.0
    %108 = vmatpush.msra.mxu0 0.0
    %109 = vmatpush.msra.mxu0 0.0
    %110 = vmatpush.msra.mxu0 0.0
    %111 = vmatpush.msra.mxu0 0.0
    %112 = vmatpush.msra.mxu0 0.0
    %113 = vmatpush.msra.mxu0 0.0
    %114 = vmatpush.msra.mxu0 0.0
    %115 = vmatpush.msra.mxu0 0.0
    %116 = vmatpush.msra.mxu0 0.0
    %117 = vmatpush.msra.mxu0 0.0
    %118 = vmatpush.msra.mxu0 0.0
    %119 = vmatpush.msra.mxu0 %v96
    %120 = vmatmul.f32.gmra.mxu0 %v72
    %v121 = vpop.f32.mrf.mxu0
    %v122 = vadd.f32 %v53, %v121
    %123 = vmatmul.f32.gmra.mxu0 %v75
    %v124 = vpop.f32.mrf.mxu0
    %v125 = vadd.f32 %v53, %v124
    %126 = vmatmul.f32.gmra.mxu0 %v78
    %v127 = vpop.f32.mrf.mxu0
    %v128 = vadd.f32 %v53, %v127
    %129 = vmatmul.f32.gmra.mxu0 %v81
    %v130 = vpop.f32.mrf.mxu0
    %v131 = vadd.f32 %v53, %v130
    %132 = vmatmul.f32.gmra.mxu0 %v84
    %v133 = vpop.f32.mrf.mxu0
    %v134 = vadd.f32 %v53, %v133
    %135 = vmatmul.f32.gmra.mxu0 %v87
    %v136 = vpop.f32.mrf.mxu0
    %v137 = vadd.f32 %v53, %v136
    %138 = vmatmul.f32.gmra.mxu0 %v90
    %v139 = vpop.f32.mrf.mxu0
    %v140 = vadd.f32 %v53, %v139
    %141 = vmatmul.f32.gmra.mxu0 %v93
    %v142 = vpop.f32.mrf.mxu0
    %v143 = vadd.f32 %v53, %v142
    %144 = vdwg.mxu0
    %145 = vmatpush.msra.mxu0 0.0
    %146 = vmatpush.msra.mxu0 0.0
    %147 = vmatpush.msra.mxu0 0.0
    %148 = vmatpush.msra.mxu0 0.0
    %149 = vmatpush.msra.mxu0 0.0
    %150 = vmatpush.msra.mxu0 0.0
    %151 = vmatpush.msra.mxu0 0.0
    %152 = vmatpush.msra.mxu0 0.0
    %153 = vmatpush.msra.mxu0 0.0
    %154 = vmatpush.msra.mxu0 0.0
    %155 = vmatpush.msra.mxu0 0.0
    %156 = vmatpush.msra.mxu0 0.0
    %157 = vmatpush.msra.mxu0 0.0
    %158 = vmatpush.msra.mxu0 0.0
    %159 = vmatpush.msra.mxu0 0.0
    %160 = vmatpush.msra.mxu0 %v98
    %161 = vmatmul.f32.gmra.mxu0 %v72
    %v162 = vpop.f32.mrf.mxu0
    %v163 = vadd.f32 %v54, %v162
    %164 = vmatmul.f32.gmra.mxu0 %v75
    %v165 = vpop.f32.mrf.mxu0
    %v166 = vadd.f32 %v54, %v165
    %167 = vmatmul.f32.gmra.mxu0 %v78
    %v168 = vpop.f32.mrf.mxu0
    %v169 = vadd.f32 %v54, %v168
    %170 = vmatmul.f32.gmra.mxu0 %v81
    %v171 = vpop.f32.mrf.mxu0
    %v172 = vadd.f32 %v54, %v171
    %173 = vmatmul.f32.gmra.mxu0 %v84
    %v174 = vpop.f32.mrf.mxu0
    %v175 = vadd.f32 %v54, %v174
    %176 = vmatmul.f32.gmra.mxu0 %v87
    %v177 = vpop.f32.mrf.mxu0
    %v178 = vadd.f32 %v54, %v177
    %179 = vmatmul.f32.gmra.mxu0 %v90
    %v180 = vpop.f32.mrf.mxu0
    %v181 = vadd.f32 %v54, %v180
    %182 = vmatmul.f32.gmra.mxu0 %v93
    %v183 = vpop.f32.mrf.mxu0
    %v184 = vadd.f32 %v54, %v183
    %185 = vdwg.mxu0
    %186 = vmatpush.msra.mxu0 0.0
    %187 = vmatpush.msra.mxu0 0.0
    %188 = vmatpush.msra.mxu0 0.0
    %189 = vmatpush.msra.mxu0 0.0
    %190 = vmatpush.msra.mxu0 0.0
    %191 = vmatpush.msra.mxu0 0.0
    %192 = vmatpush.msra.mxu0 0.0
    %193 = vmatpush.msra.mxu0 0.0
    %194 = vmatpush.msra.mxu0 0.0
    %195 = vmatpush.msra.mxu0 0.0
    %196 = vmatpush.msra.mxu0 0.0
    %197 = vmatpush.msra.mxu0 0.0
    %198 = vmatpush.msra.mxu0 0.0
    %199 = vmatpush.msra.mxu0 0.0
    %200 = vmatpush.msra.mxu0 0.0
    %201 = vmatpush.msra.mxu0 %v100
    %202 = vmatmul.f32.gmra.mxu0 %v72
    %v203 = vpop.f32.mrf.mxu0
    %v204 = vadd.f32 %v55, %v203
    %205 = vmatmul.f32.gmra.mxu0 %v75
    %v206 = vpop.f32.mrf.mxu0
    %v207 = vadd.f32 %v55, %v206
    %208 = vmatmul.f32.gmra.mxu0 %v78
    %v209 = vpop.f32.mrf.mxu0
    %v210 = vadd.f32 %v55, %v209
    %211 = vmatmul.f32.gmra.mxu0 %v81
    %v212 = vpop.f32.mrf.mxu0
    %v213 = vadd.f32 %v55, %v212
    %214 = vmatmul.f32.gmra.mxu0 %v84
    %v215 = vpop.f32.mrf.mxu0
    %v216 = vadd.f32 %v55, %v215
    %217 = vmatmul.f32.gmra.mxu0 %v87
    %v218 = vpop.f32.mrf.mxu0
    %v219 = vadd.f32 %v55, %v218
    %220 = vmatmul.f32.gmra.mxu0 %v90
    %v221 = vpop.f32.mrf.mxu0
    %v222 = vadd.f32 %v55, %v221
    %223 = vmatmul.f32.gmra.mxu0 %v93
    %v224 = vpop.f32.mrf.mxu0
    %v225 = vadd.f32 %v55, %v224
    %226 = vdwg.mxu0
    %227 = vmatpush.msra.mxu0 0.0
    %228 = vmatpush.msra.mxu0 0.0
    %229 = vmatpush.msra.mxu0 0.0
    %230 = vmatpush.msra.mxu0 0.0
    %231 = vmatpush.msra.mxu0 0.0
    %232 = vmatpush.msra.mxu0 0.0
    %233 = vmatpush.msra.mxu0 0.0
    %234 = vmatpush.msra.mxu0 0.0
    %235 = vmatpush.msra.mxu0 0.0
    %236 = vmatpush.msra.mxu0 0.0
    %237 = vmatpush.msra.mxu0 0.0
    %238 = vmatpush.msra.mxu0 0.0
    %239 = vmatpush.msra.mxu0 0.0
    %240 = vmatpush.msra.mxu0 0.0
    %241 = vmatpush.msra.mxu0 0.0
    %242 = vmatpush.msra.mxu0 %v102
    %243 = vmatmul.f32.gmra.mxu0 %v72
    %v244 = vpop.f32.mrf.mxu0
    %v245 = vadd.f32 %v56, %v244
    %246 = vmatmul.f32.gmra.mxu0 %v75
    %v247 = vpop.f32.mrf.mxu0
    %v248 = vadd.f32 %v56, %v247
    %249 = vmatmul.f32.gmra.mxu0 %v78
    %v250 = vpop.f32.mrf.mxu0
    %v251 = vadd.f32 %v56, %v250
    %252 = vmatmul.f32.gmra.mxu0 %v81
    %v253 = vpop.f32.mrf.mxu0
    %v254 = vadd.f32 %v56, %v253
    %255 = vmatmul.f32.gmra.mxu0 %v84
    %v256 = vpop.f32.mrf.mxu0
    %v257 = vadd.f32 %v56, %v256
    %258 = vmatmul.f32.gmra.mxu0 %v87
    %v259 = vpop.f32.mrf.mxu0
    %v260 = vadd.f32 %v56, %v259
    %261 = vmatmul.f32.gmra.mxu0 %v90
    %v262 = vpop.f32.mrf.mxu0
    %v263 = vadd.f32 %v56, %v262
    %264 = vmatmul.f32.gmra.mxu0 %v93
    %v265 = vpop.f32.mrf.mxu0
    %v266 = vadd.f32 %v56, %v265
    %267 = vdwg.mxu0
    %268 = vst [vmem:[#allocation2] sm:$0xff] %v122
    %269 = vst [vmem:[#allocation2 + $0x8] sm:$0xff] %v163
    %270 = vst [vmem:[#allocation2 + $0x10] sm:$0xff] %v204
    %271 = vst [vmem:[#allocation2 + $0x18] sm:$0xff] %v245
    %272 = vst [vmem:[#allocation2 + $0x20] sm:$0xff] %v125
    %273 = vst [vmem:[#allocation2 + $0x28] sm:$0xff] %v166
    %274 = vst [vmem:[#allocation2 + $0x30] sm:$0xff] %v207
    %275 = vst [vmem:[#allocation2 + $0x38] sm:$0xff] %v248
    %276 = vst [vmem:[#allocation2 + $0x40] sm:$0xff] %v128
    %277 = vst [vmem:[#allocation2 + $0x48] sm:$0xff] %v169
    %278 = vst [vmem:[#allocation2 + $0x50] sm:$0xff] %v210
    %279 = vst [vmem:[#allocation2 + $0x58] sm:$0xff] %v251
    %280 = vst [vmem:[#allocation2 + $0x60] sm:$0xff] %v131
    %281 = vst [vmem:[#allocation2 + $0x68] sm:$0xff] %v172
    %282 = vst [vmem:[#allocation2 + $0x70] sm:$0xff] %v213
    %283 = vst [vmem:[#allocation2 + $0x78] sm:$0xff] %v254
    %284 = vst [vmem:[#allocation2 + $0x80] sm:$0xff] %v134
    %285 = vst [vmem:[#allocation2 + $0x88] sm:$0xff] %v175
    %286 = vst [vmem:[#allocation2 + $0x90] sm:$0xff] %v216
    %287 = vst [vmem:[#allocation2 + $0x98] sm:$0xff] %v257
    %288 = vst [vmem:[#allocation2 + $0xa0] sm:$0xff] %v137
    %289 = vst [vmem:[#allocation2 + $0xa8] sm:$0xff] %v178
    %290 = vst [vmem:[#allocation2 + $0xb0] sm:$0xff] %v219
    %291 = vst [vmem:[#allocation2 + $0xb8] sm:$0xff] %v260
    %292 = vst [vmem:[#allocation2 + $0xc0] sm:$0xff] %v140
    %293 = vst [vmem:[#allocation2 + $0xc8] sm:$0xff] %v181
    %294 = vst [vmem:[#allocation2 + $0xd0] sm:$0xff] %v222
    %295 = vst [vmem:[#allocation2 + $0xd8] sm:$0xff] %v263
    %296 = vst [vmem:[#allocation2 + $0xe0] sm:$0xff] %v143
    %297 = vst [vmem:[#allocation2 + $0xe8] sm:$0xff] %v184
    %298 = vst [vmem:[#allocation2 + $0xf0] sm:$0xff] %v225
    %299 = vst [vmem:[#allocation2 + $0xf8] sm:$0xff] %v266
    %v300 = vld [vmem:[#allocation2] sm:$0xff]
    %v301 = vld [vmem:[#allocation2 + $0x8] sm:$0xff]
    %v302 = vld [vmem:[#allocation2 + $0x10] sm:$0xff]
    %v303 = vld [vmem:[#allocation2 + $0x18] sm:$0xff]
    %v304 = vld [vmem:[#allocation4] sm:$0xff]
    %v305 = vld [vmem:[#allocation4 + $0x8] sm:$0xff]
    %v306 = vld [vmem:[#allocation4 + $0x10] sm:$0xff]
    %v307 = vld [vmem:[#allocation4 + $0x18] sm:$0xff]
    %v308 = vld [vmem:[#allocation4 + $0x20] sm:$0xff]
    %v309 = vld [vmem:[#allocation4 + $0x28] sm:$0xff]
    %v310 = vld [vmem:[#allocation4 + $0x30] sm:$0xff]
    %v311 = vld [vmem:[#allocation4 + $0x38] sm:$0xff]
    %v312 = vld [vmem:[#allocation4 + $0x40] sm:$0xff]
    %v313 = vld [vmem:[#allocation4 + $0x48] sm:$0xff]
    %v314 = vld [vmem:[#allocation4 + $0x50] sm:$0xff]
    %v315 = vld [vmem:[#allocation4 + $0x58] sm:$0xff]
    %v316 = vld [vmem:[#allocation4 + $0x60] sm:$0xff]
    %v317 = vld [vmem:[#allocation4 + $0x68] sm:$0xff]
    %v318 = vld [vmem:[#allocation4 + $0x70] sm:$0xff]
    %v319 = vld [vmem:[#allocation4 + $0x78] sm:$0xff]
    %v320 = vld [vmem:[#allocation4 + $0x80] sm:$0xff]
    %v321 = vld [vmem:[#allocation4 + $0x88] sm:$0xff]
    %v322 = vld [vmem:[#allocation4 + $0x90] sm:$0xff]
    %v323 = vld [vmem:[#allocation4 + $0x98] sm:$0xff]
    %v324 = vld [vmem:[#allocation4 + $0xa0] sm:$0xff]
    %v325 = vld [vmem:[#allocation4 + $0xa8] sm:$0xff]
    %v326 = vld [vmem:[#allocation4 + $0xb0] sm:$0xff]
    %v327 = vld [vmem:[#allocation4 + $0xb8] sm:$0xff]
    %v328 = vld [vmem:[#allocation4 + $0xc0] sm:$0xff]
    %v329 = vld [vmem:[#allocation4 + $0xc8] sm:$0xff]
    %v330 = vld [vmem:[#allocation4 + $0xd0] sm:$0xff]
    %v331 = vld [vmem:[#allocation4 + $0xd8] sm:$0xff]
    %v332 = vld [vmem:[#allocation4 + $0xe0] sm:$0xff]
    %v333 = vld [vmem:[#allocation4 + $0xe8] sm:$0xff]
    %v334 = vld [vmem:[#allocation4 + $0xf0] sm:$0xff]
    %v335 = vld [vmem:[#allocation4 + $0xf8] sm:$0xff]
    %v336 = vld [vmem:[#allocation4 + $0x100] sm:$0xff]
    %v337 = vld [vmem:[#allocation4 + $0x108] sm:$0xff]
    %v338 = vld [vmem:[#allocation4 + $0x110] sm:$0xff]
    %v339 = vld [vmem:[#allocation4 + $0x118] sm:$0xff]
    %v340 = vld [vmem:[#allocation4 + $0x120] sm:$0xff]
    %v341 = vld [vmem:[#allocation4 + $0x128] sm:$0xff]
    %v342 = vld [vmem:[#allocation4 + $0x130] sm:$0xff]
    %v343 = vld [vmem:[#allocation4 + $0x138] sm:$0xff]
    %v344 = vld [vmem:[#allocation4 + $0x140] sm:$0xff]
    %v345 = vld [vmem:[#allocation4 + $0x148] sm:$0xff]
    %v346 = vld [vmem:[#allocation4 + $0x150] sm:$0xff]
    %v347 = vld [vmem:[#allocation4 + $0x158] sm:$0xff]
    %v348 = vld [vmem:[#allocation4 + $0x160] sm:$0xff]
    %v349 = vld [vmem:[#allocation4 + $0x168] sm:$0xff]
    %v350 = vld [vmem:[#allocation4 + $0x170] sm:$0xff]
    %v351 = vld [vmem:[#allocation4 + $0x178] sm:$0xff]
    %v352 = vld [vmem:[#allocation4 + $0x180] sm:$0xff]
    %v353 = vld [vmem:[#allocation4 + $0x188] sm:$0xff]
    %v354 = vld [vmem:[#allocation4 + $0x190] sm:$0xff]
    %v355 = vld [vmem:[#allocation4 + $0x198] sm:$0xff]
    %v356 = vld [vmem:[#allocation4 + $0x1a0] sm:$0xff]
    %v357 = vld [vmem:[#allocation4 + $0x1a8] sm:$0xff]
    %v358 = vld [vmem:[#allocation4 + $0x1b0] sm:$0xff]
    %v359 = vld [vmem:[#allocation4 + $0x1b8] sm:$0xff]
    %v360 = vld [vmem:[#allocation4 + $0x1c0] sm:$0xff]
    %v361 = vld [vmem:[#allocation4 + $0x1c8] sm:$0xff]
    %v362 = vld [vmem:[#allocation4 + $0x1d0] sm:$0xff]
    %v363 = vld [vmem:[#allocation4 + $0x1d8] sm:$0xff]
    %v364 = vld [vmem:[#allocation4 + $0x1e0] sm:$0xff]
    %v365 = vld [vmem:[#allocation4 + $0x1e8] sm:$0xff]
    %v366 = vld [vmem:[#allocation4 + $0x1f0] sm:$0xff]
    %v367 = vld [vmem:[#allocation4 + $0x1f8] sm:$0xff]
    %368 = vmatpush.msra.mxu0 %v364
    %369 = vmatpush.msra.mxu0 %v360
    %370 = vmatpush.msra.mxu0 %v356
    %371 = vmatpush.msra.mxu0 %v352
    %372 = vmatpush.msra.mxu0 %v348
    %373 = vmatpush.msra.mxu0 %v344
    %374 = vmatpush.msra.mxu0 %v340
    %375 = vmatpush.msra.mxu0 %v336
    %376 = vmatpush.msra.mxu0 %v332
    %377 = vmatpush.msra.mxu0 %v328
    %378 = vmatpush.msra.mxu0 %v324
    %379 = vmatpush.msra.mxu0 %v320
    %380 = vmatpush.msra.mxu0 %v316
    %381 = vmatpush.msra.mxu0 %v312
    %382 = vmatpush.msra.mxu0 %v308
    %383 = vmatpush.msra.mxu0 %v304
    %384 = vmatmul.f32.gmra.mxu0 0.0
    %v385 = vpop.f32.mrf.mxu0
    %v386 = vadd.f32 0.0, %v385
    %387 = vdwg.mxu0
    %388 = vmatpush.msra.mxu0 %v365
    %389 = vmatpush.msra.mxu0 %v361
    %390 = vmatpush.msra.mxu0 %v357
    %391 = vmatpush.msra.mxu0 %v353
    %392 = vmatpush.msra.mxu0 %v349
    %393 = vmatpush.msra.mxu0 %v345
    %394 = vmatpush.msra.mxu0 %v341
    %395 = vmatpush.msra.mxu0 %v337
    %396 = vmatpush.msra.mxu0 %v333
    %397 = vmatpush.msra.mxu0 %v329
    %398 = vmatpush.msra.mxu0 %v325
    %399 = vmatpush.msra.mxu0 %v321
    %400 = vmatpush.msra.mxu0 %v317
    %401 = vmatpush.msra.mxu0 %v313
    %402 = vmatpush.msra.mxu0 %v309
    %403 = vmatpush.msra.mxu0 %v305
    %404 = vmatmul.f32.gmra.mxu0 0.0
    %v405 = vpop.f32.mrf.mxu0
    %v406 = vadd.f32 0.0, %v405
    %407 = vdwg.mxu0
    %408 = vmatpush.msra.mxu0 %v366
    %409 = vmatpush.msra.mxu0 %v362
    %410 = vmatpush.msra.mxu0 %v358
    %411 = vmatpush.msra.mxu0 %v354
    %412 = vmatpush.msra.mxu0 %v350
    %413 = vmatpush.msra.mxu0 %v346
    %414 = vmatpush.msra.mxu0 %v342
    %415 = vmatpush.msra.mxu0 %v338
    %416 = vmatpush.msra.mxu0 %v334
    %417 = vmatpush.msra.mxu0 %v330
    %418 = vmatpush.msra.mxu0 %v326
    %419 = vmatpush.msra.mxu0 %v322
    %420 = vmatpush.msra.mxu0 %v318
    %421 = vmatpush.msra.mxu0 %v314
    %422 = vmatpush.msra.mxu0 %v310
    %423 = vmatpush.msra.mxu0 %v306
    %424 = vmatmul.f32.gmra.mxu0 0.0
    %v425 = vpop.f32.mrf.mxu0
    %v426 = vadd.f32 0.0, %v425
    %427 = vdwg.mxu0
    %428 = vmatpush.msra.mxu0 %v367
    %429 = vmatpush.msra.mxu0 %v363
    %430 = vmatpush.msra.mxu0 %v359
    %431 = vmatpush.msra.mxu0 %v355
    %432 = vmatpush.msra.mxu0 %v351
    %433 = vmatpush.msra.mxu0 %v347
    %434 = vmatpush.msra.mxu0 %v343
    %435 = vmatpush.msra.mxu0 %v339
    %436 = vmatpush.msra.mxu0 %v335
    %437 = vmatpush.msra.mxu0 %v331
    %438 = vmatpush.msra.mxu0 %v327
    %439 = vmatpush.msra.mxu0 %v323
    %440 = vmatpush.msra.mxu0 %v319
    %441 = vmatpush.msra.mxu0 %v315
    %442 = vmatpush.msra.mxu0 %v311
    %443 = vmatpush.msra.mxu0 %v307
    %444 = vmatmul.f32.gmra.mxu0 0.0
    %v445 = vpop.f32.mrf.mxu0
    %v446 = vadd.f32 0.0, %v445
    %447 = vdwg.mxu0
    %v448 = vadd.f32 %v300, %v386
    %v449 = vadd.f32 %v301, %v406
    %v450 = vadd.f32 %v302, %v426
    %v451 = vadd.f32 %v303, %v446
    %v452 = vxor.u32 %v448, 2147483648
    %v453 = vmul.f32 %v452, 1.442695
    %v454 = vpow.pop %v453
    %v455 = vadd.f32 %v454, 1.0
    %v456 = vrcp.pop %v455
    %v457 = vmul.f32 %v455, %v456
    %v458 = vsub.f32 1.0, %v457
    %v459 = vmul.f32 %v456, %v458
    %v460 = vadd.f32 %v456, %v459
    %vm461 = vweird.f32 %v455
    %vm462 = vweird.f32 %v456
    %vm463 = vmor %vm461, %vm462
    %v464 = vsel %vm463, %v456, %v460
    %v465 = vand.u32 2147483647, %v455
    %vm466 = vcmp.eq.f32.partialorder %v465, 8.507059e+37
    %v467 = vand.u32 %v455, 2147483648
    %v468 = vor.u32 1.1754944e-38, %v467
    %v469 = vsel %vm466, %v468, %v464
    %v470 = vmul.f32 1.0, %v469
    %v471 = vxor.u32 %v449, 2147483648
    %v472 = vmul.f32 %v471, 1.442695
    %v473 = vpow.pop %v472
    %v474 = vadd.f32 %v473, 1.0
    %v475 = vrcp.pop %v474
    %v476 = vmul.f32 %v474, %v475
    %v477 = vsub.f32 1.0, %v476
    %v478 = vmul.f32 %v475, %v477
    %v479 = vadd.f32 %v475, %v478
    %vm480 = vweird.f32 %v474
    %vm481 = vweird.f32 %v475
    %vm482 = vmor %vm480, %vm481
    %v483 = vsel %vm482, %v475, %v479
    %v484 = vand.u32 2147483647, %v474
    %vm485 = vcmp.eq.f32.partialorder %v484, 8.507059e+37
    %v486 = vand.u32 %v474, 2147483648
    %v487 = vor.u32 1.1754944e-38, %v486
    %v488 = vsel %vm485, %v487, %v483
    %v489 = vmul.f32 1.0, %v488
    %v490 = vtanh.pop %v450
    %v491 = vxor.u32 %v451, 2147483648
    %v492 = vmul.f32 %v491, 1.442695
    %v493 = vpow.pop %v492
    %v494 = vadd.f32 %v493, 1.0
    %v495 = vrcp.pop %v494
    %v496 = vmul.f32 %v494, %v495
    %v497 = vsub.f32 1.0, %v496
    %v498 = vmul.f32 %v495, %v497
    %v499 = vadd.f32 %v495, %v498
    %vm500 = vweird.f32 %v494
    %vm501 = vweird.f32 %v495
    %vm502 = vmor %vm500, %vm501
    %v503 = vsel %vm502, %v495, %v499
    %v504 = vand.u32 2147483647, %v494
    %vm505 = vcmp.eq.f32.partialorder %v504, 8.507059e+37
    %v506 = vand.u32 %v494, 2147483648
    %v507 = vor.u32 1.1754944e-38, %v506
    %v508 = vsel %vm505, %v507, %v503
    %v509 = vmul.f32 1.0, %v508
    %v510 = vmul.f32 %v489, 0.0
    %v511 = vmul.f32 %v470, %v490
    %v512 = vadd.f32 %v510, %v511
    %v513 = vtanh.pop %v512
    %v514 = vmul.f32 %v509, %v513
    %s515 = scalar_lea.vmem [#allocation2], 32
    %v516 = vld [vmem:[%s515] sm:$0xff]
    %v517 = vld [vmem:[%s515 + $0x8] sm:$0xff]
    %v518 = vld [vmem:[%s515 + $0x10] sm:$0xff]
    %v519 = vld [vmem:[%s515 + $0x18] sm:$0xff]
    %520 = vmatpush.msra.mxu0 %v364
    %521 = vmatpush.msra.mxu0 %v360
    %522 = vmatpush.msra.mxu0 %v356
    %523 = vmatpush.msra.mxu0 %v352
    %524 = vmatpush.msra.mxu0 %v348
    %525 = vmatpush.msra.mxu0 %v344
    %526 = vmatpush.msra.mxu0 %v340
    %527 = vmatpush.msra.mxu0 %v336
    %528 = vmatpush.msra.mxu0 %v332
    %529 = vmatpush.msra.mxu0 %v328
    %530 = vmatpush.msra.mxu0 %v324
    %531 = vmatpush.msra.mxu0 %v320
    %532 = vmatpush.msra.mxu0 %v316
    %533 = vmatpush.msra.mxu0 %v312
    %534 = vmatpush.msra.mxu0 %v308
    %535 = vmatpush.msra.mxu0 %v304
    %536 = vmatmul.f32.gmra.mxu0 %v514
    %v537 = vpop.f32.mrf.mxu0
    %v538 = vadd.f32 0.0, %v537
    %539 = vdwg.mxu0
    %540 = vmatpush.msra.mxu0 %v365
    %541 = vmatpush.msra.mxu0 %v361
    %542 = vmatpush.msra.mxu0 %v357
    %543 = vmatpush.msra.mxu0 %v353
    %544 = vmatpush.msra.mxu0 %v349
    %545 = vmatpush.msra.mxu0 %v345
    %546 = vmatpush.msra.mxu0 %v341
    %547 = vmatpush.msra.mxu0 %v337
    %548 = vmatpush.msra.mxu0 %v333
    %549 = vmatpush.msra.mxu0 %v329
    %550 = vmatpush.msra.mxu0 %v325
    %551 = vmatpush.msra.mxu0 %v321
    %552 = vmatpush.msra.mxu0 %v317
    %553 = vmatpush.msra.mxu0 %v313
    %554 = vmatpush.msra.mxu0 %v309
    %555 = vmatpush.msra.mxu0 %v305
    %556 = vmatmul.f32.gmra.mxu0 %v514
    %v557 = vpop.f32.mrf.mxu0
    %v558 = vadd.f32 0.0, %v557
    %559 = vdwg.mxu0
    %560 = vmatpush.msra.mxu0 %v366
    %561 = vmatpush.msra.mxu0 %v362
    %562 = vmatpush.msra.mxu0 %v358
    %563 = vmatpush.msra.mxu0 %v354
    %564 = vmatpush.msra.mxu0 %v350
    %565 = vmatpush.msra.mxu0 %v346
    %566 = vmatpush.msra.mxu0 %v342
    %567 = vmatpush.msra.mxu0 %v338
    %568 = vmatpush.msra.mxu0 %v334
    %569 = vmatpush.msra.mxu0 %v330
    %570 = vmatpush.msra.mxu0 %v326
    %571 = vmatpush.msra.mxu0 %v322
    %572 = vmatpush.msra.mxu0 %v318
    %573 = vmatpush.msra.mxu0 %v314
    %574 = vmatpush.msra.mxu0 %v310
    %575 = vmatpush.msra.mxu0 %v306
    %576 = vmatmul.f32.gmra.mxu0 %v514
    %v577 = vpop.f32.mrf.mxu0
    %v578 = vadd.f32 0.0, %v577
    %579 = vdwg.mxu0
    %580 = vmatpush.msra.mxu0 %v367
    %581 = vmatpush.msra.mxu0 %v363
    %582 = vmatpush.msra.mxu0 %v359
    %583 = vmatpush.msra.mxu0 %v355
    %584 = vmatpush.msra.mxu0 %v351
    %585 = vmatpush.msra.mxu0 %v347
    %586 = vmatpush.msra.mxu0 %v343
    %587 = vmatpush.msra.mxu0 %v339
    %588 = vmatpush.msra.mxu0 %v335
    %589 = vmatpush.msra.mxu0 %v331
    %590 = vmatpush.msra.mxu0 %v327
    %591 = vmatpush.msra.mxu0 %v323
    %592 = vmatpush.msra.mxu0 %v319
    %593 = vmatpush.msra.mxu0 %v315
    %594 = vmatpush.msra.mxu0 %v311
    %595 = vmatpush.msra.mxu0 %v307
    %596 = vmatmul.f32.gmra.mxu0 %v514
    %v597 = vpop.f32.mrf.mxu0
    %v598 = vadd.f32 0.0, %v597
    %599 = vdwg.mxu0
    %v600 = vadd.f32 %v516, %v538
    %v601 = vadd.f32 %v517, %v558
    %v602 = vadd.f32 %v518, %v578
    %v603 = vadd.f32 %v519, %v598
    %v604 = vxor.u32 %v600, 2147483648
    %v605 = vmul.f32 %v604, 1.442695
    %v606 = vpow.pop %v605
    %v607 = vadd.f32 %v606, 1.0
    %v608 = vrcp.pop %v607
    %v609 = vmul.f32 %v607, %v608
    %v610 = vsub.f32 1.0, %v609
    %v611 = vmul.f32 %v608, %v610
    %v612 = vadd.f32 %v608, %v611
    %vm613 = vweird.f32 %v607
    %vm614 = vweird.f32 %v608
    %vm615 = vmor %vm613, %vm614
    %v616 = vsel %vm615, %v608, %v612
    %v617 = vand.u32 2147483647, %v607
    %vm618 = vcmp.eq.f32.partialorder %v617, 8.507059e+37
    %v619 = vand.u32 %v607, 2147483648
    %v620 = vor.u32 1.1754944e-38, %v619
    %v621 = vsel %vm618, %v620, %v616
    %v622 = vmul.f32 1.0, %v621
    %v623 = vxor.u32 %v601, 2147483648
    %v624 = vmul.f32 %v623, 1.442695
    %v625 = vpow.pop %v624
    %v626 = vadd.f32 %v625, 1.0
    %v627 = vrcp.pop %v626
    %v628 = vmul.f32 %v626, %v627
    %v629 = vsub.f32 1.0, %v628
    %v630 = vmul.f32 %v627, %v629
    %v631 = vadd.f32 %v627, %v630
    %vm632 = vweird.f32 %v626
    %vm633 = vweird.f32 %v627
    %vm634 = vmor %vm632, %vm633
    %v635 = vsel %vm634, %v627, %v631
    %v636 = vand.u32 2147483647, %v626
    %vm637 = vcmp.eq.f32.partialorder %v636, 8.507059e+37
    %v638 = vand.u32 %v626, 2147483648
    %v639 = vor.u32 1.1754944e-38, %v638
    %v640 = vsel %vm637, %v639, %v635
    %v641 = vmul.f32 1.0, %v640
    %v642 = vtanh.pop %v602
    %v643 = vxor.u32 %v603, 2147483648
    %v644 = vmul.f32 %v643, 1.442695
    %v645 = vpow.pop %v644
    %v646 = vadd.f32 %v645, 1.0
    %v647 = vrcp.pop %v646
    %v648 = vmul.f32 %v646, %v647
    %v649 = vsub.f32 1.0, %v648
    %v650 = vmul.f32 %v647, %v649
    %v651 = vadd.f32 %v647, %v650
    %vm652 = vweird.f32 %v646
    %vm653 = vweird.f32 %v647
    %vm654 = vmor %vm652, %vm653
    %v655 = vsel %vm654, %v647, %v651
    %v656 = vand.u32 2147483647, %v646
    %vm657 = vcmp.eq.f32.partialorder %v656, 8.507059e+37
    %v658 = vand.u32 %v646, 2147483648
    %v659 = vor.u32 1.1754944e-38, %v658
    %v660 = vsel %vm657, %v659, %v655
    %v661 = vmul.f32 1.0, %v660
    %v662 = vmul.f32 %v641, %v512
    %v663 = vmul.f32 %v622, %v642
    %v664 = vadd.f32 %v662, %v663
    %v665 = vtanh.pop %v664
    %v666 = vmul.f32 %v661, %v665
    %s667 = scalar_lea.vmem [#allocation2], 64
    %v668 = vld [vmem:[%s667] sm:$0xff]
    %v669 = vld [vmem:[%s667 + $0x8] sm:$0xff]
    %v670 = vld [vmem:[%s667 + $0x10] sm:$0xff]
    %v671 = vld [vmem:[%s667 + $0x18] sm:$0xff]
    %672 = vmatpush.msra.mxu0 %v364
    %673 = vmatpush.msra.mxu0 %v360
    %674 = vmatpush.msra.mxu0 %v356
    %675 = vmatpush.msra.mxu0 %v352
    %676 = vmatpush.msra.mxu0 %v348
    %677 = vmatpush.msra.mxu0 %v344
    %678 = vmatpush.msra.mxu0 %v340
    %679 = vmatpush.msra.mxu0 %v336
    %680 = vmatpush.msra.mxu0 %v332
    %681 = vmatpush.msra.mxu0 %v328
    %682 = vmatpush.msra.mxu0 %v324
    %683 = vmatpush.msra.mxu0 %v320
    %684 = vmatpush.msra.mxu0 %v316
    %685 = vmatpush.msra.mxu0 %v312
    %686 = vmatpush.msra.mxu0 %v308
    %687 = vmatpush.msra.mxu0 %v304
    %688 = vmatmul.f32.gmra.mxu0 %v666
    %v689 = vpop.f32.mrf.mxu0
    %v690 = vadd.f32 0.0, %v689
    %691 = vdwg.mxu0
    %692 = vmatpush.msra.mxu0 %v365
    %693 = vmatpush.msra.mxu0 %v361
    %694 = vmatpush.msra.mxu0 %v357
    %695 = vmatpush.msra.mxu0 %v353
    %696 = vmatpush.msra.mxu0 %v349
    %697 = vmatpush.msra.mxu0 %v345
    %698 = vmatpush.msra.mxu0 %v341
    %699 = vmatpush.msra.mxu0 %v337
    %700 = vmatpush.msra.mxu0 %v333
    %701 = vmatpush.msra.mxu0 %v329
    %702 = vmatpush.msra.mxu0 %v325
    %703 = vmatpush.msra.mxu0 %v321
    %704 = vmatpush.msra.mxu0 %v317
    %705 = vmatpush.msra.mxu0 %v313
    %706 = vmatpush.msra.mxu0 %v309
    %707 = vmatpush.msra.mxu0 %v305
    %708 = vmatmul.f32.gmra.mxu0 %v666
    %v709 = vpop.f32.mrf.mxu0
    %v710 = vadd.f32 0.0, %v709
    %711 = vdwg.mxu0
    %712 = vmatpush.msra.mxu0 %v366
    %713 = vmatpush.msra.mxu0 %v362
    %714 = vmatpush.msra.mxu0 %v358
    %715 = vmatpush.msra.mxu0 %v354
    %716 = vmatpush.msra.mxu0 %v350
    %717 = vmatpush.msra.mxu0 %v346
    %718 = vmatpush.msra.mxu0 %v342
    %719 = vmatpush.msra.mxu0 %v338
    %720 = vmatpush.msra.mxu0 %v334
    %721 = vmatpush.msra.mxu0 %v330
    %722 = vmatpush.msra.mxu0 %v326
    %723 = vmatpush.msra.mxu0 %v322
    %724 = vmatpush.msra.mxu0 %v318
    %725 = vmatpush.msra.mxu0 %v314
    %726 = vmatpush.msra.mxu0 %v310
    %727 = vmatpush.msra.mxu0 %v306
    %728 = vmatmul.f32.gmra.mxu0 %v666
    %v729 = vpop.f32.mrf.mxu0
    %v730 = vadd.f32 0.0, %v729
    %731 = vdwg.mxu0
    %732 = vmatpush.msra.mxu0 %v367
    %733 = vmatpush.msra.mxu0 %v363
    %734 = vmatpush.msra.mxu0 %v359
    %735 = vmatpush.msra.mxu0 %v355
    %736 = vmatpush.msra.mxu0 %v351
    %737 = vmatpush.msra.mxu0 %v347
    %738 = vmatpush.msra.mxu0 %v343
    %739 = vmatpush.msra.mxu0 %v339
    %740 = vmatpush.msra.mxu0 %v335
    %741 = vmatpush.msra.mxu0 %v331
    %742 = vmatpush.msra.mxu0 %v327
    %743 = vmatpush.msra.mxu0 %v323
    %744 = vmatpush.msra.mxu0 %v319
    %745 = vmatpush.msra.mxu0 %v315
    %746 = vmatpush.msra.mxu0 %v311
    %747 = vmatpush.msra.mxu0 %v307
    %748 = vmatmul.f32.gmra.mxu0 %v666
    %v749 = vpop.f32.mrf.mxu0
    %v750 = vadd.f32 0.0, %v749
    %751 = vdwg.mxu0
    %v752 = vadd.f32 %v668, %v690
    %v753 = vadd.f32 %v669, %v710
    %v754 = vadd.f32 %v670, %v730
    %v755 = vadd.f32 %v671, %v750
    %v756 = vxor.u32 %v752, 2147483648
    %v757 = vmul.f32 %v756, 1.442695
    %v758 = vpow.pop %v757
    %v759 = vadd.f32 %v758, 1.0
    %v760 = vrcp.pop %v759
    %v761 = vmul.f32 %v759, %v760
    %v762 = vsub.f32 1.0, %v761
    %v763 = vmul.f32 %v760, %v762
    %v764 = vadd.f32 %v760, %v763
    %vm765 = vweird.f32 %v759
    %vm766 = vweird.f32 %v760
    %vm767 = vmor %vm765, %vm766
    %v768 = vsel %vm767, %v760, %v764
    %v769 = vand.u32 2147483647, %v759
    %vm770 = vcmp.eq.f32.partialorder %v769, 8.507059e+37
    %v771 = vand.u32 %v759, 2147483648
    %v772 = vor.u32 1.1754944e-38, %v771
    %v773 = vsel %vm770, %v772, %v768
    %v774 = vmul.f32 1.0, %v773
    %v775 = vxor.u32 %v753, 2147483648
    %v776 = vmul.f32 %v775, 1.442695
    %v777 = vpow.pop %v776
    %v778 = vadd.f32 %v777, 1.0
    %v779 = vrcp.pop %v778
    %v780 = vmul.f32 %v778, %v779
    %v781 = vsub.f32 1.0, %v780
    %v782 = vmul.f32 %v779, %v781
    %v783 = vadd.f32 %v779, %v782
    %vm784 = vweird.f32 %v778
    %vm785 = vweird.f32 %v779
    %vm786 = vmor %vm784, %vm785
    %v787 = vsel %vm786, %v779, %v783
    %v788 = vand.u32 2147483647, %v778
    %vm789 = vcmp.eq.f32.partialorder %v788, 8.507059e+37
    %v790 = vand.u32 %v778, 2147483648
    %v791 = vor.u32 1.1754944e-38, %v790
    %v792 = vsel %vm789, %v791, %v787
    %v793 = vmul.f32 1.0, %v792
    %v794 = vtanh.pop %v754
    %v795 = vxor.u32 %v755, 2147483648
    %v796 = vmul.f32 %v795, 1.442695
    %v797 = vpow.pop %v796
    %v798 = vadd.f32 %v797, 1.0
    %v799 = vrcp.pop %v798
    %v800 = vmul.f32 %v798, %v799
    %v801 = vsub.f32 1.0, %v800
    %v802 = vmul.f32 %v799, %v801
    %v803 = vadd.f32 %v799, %v802
    %vm804 = vweird.f32 %v798
    %vm805 = vweird.f32 %v799
    %vm806 = vmor %vm804, %vm805
    %v807 = vsel %vm806, %v799, %v803
    %v808 = vand.u32 2147483647, %v798
    %vm809 = vcmp.eq.f32.partialorder %v808, 8.507059e+37
    %v810 = vand.u32 %v798, 2147483648
    %v811 = vor.u32 1.1754944e-38, %v810
    %v812 = vsel %vm809, %v811, %v807
    %v813 = vmul.f32 1.0, %v812
    %v814 = vmul.f32 %v793, %v664
    %v815 = vmul.f32 %v774, %v794
    %v816 = vadd.f32 %v814, %v815
    %v817 = vtanh.pop %v816
    %v818 = vmul.f32 %v813, %v817
    %s819 = scalar_lea.vmem [#allocation2], 96
    %v820 = vld [vmem:[%s819] sm:$0xff]
    %v821 = vld [vmem:[%s819 + $0x8] sm:$0xff]
    %v822 = vld [vmem:[%s819 + $0x10] sm:$0xff]
    %v823 = vld [vmem:[%s819 + $0x18] sm:$0xff]
    %824 = vmatpush.msra.mxu0 %v364
    %825 = vmatpush.msra.mxu0 %v360
    %826 = vmatpush.msra.mxu0 %v356
    %827 = vmatpush.msra.mxu0 %v352
    %828 = vmatpush.msra.mxu0 %v348
    %829 = vmatpush.msra.mxu0 %v344
    %830 = vmatpush.msra.mxu0 %v340
    %831 = vmatpush.msra.mxu0 %v336
    %832 = vmatpush.msra.mxu0 %v332
    %833 = vmatpush.msra.mxu0 %v328
    %834 = vmatpush.msra.mxu0 %v324
    %835 = vmatpush.msra.mxu0 %v320
    %836 = vmatpush.msra.mxu0 %v316
    %837 = vmatpush.msra.mxu0 %v312
    %838 = vmatpush.msra.mxu0 %v308
    %839 = vmatpush.msra.mxu0 %v304
    %840 = vmatmul.f32.gmra.mxu0 %v818
    %v841 = vpop.f32.mrf.mxu0
    %v842 = vadd.f32 0.0, %v841
    %843 = vdwg.mxu0
    %844 = vmatpush.msra.mxu0 %v365
    %845 = vmatpush.msra.mxu0 %v361
    %846 = vmatpush.msra.mxu0 %v357
    %847 = vmatpush.msra.mxu0 %v353
    %848 = vmatpush.msra.mxu0 %v349
    %849 = vmatpush.msra.mxu0 %v345
    %850 = vmatpush.msra.mxu0 %v341
    %851 = vmatpush.msra.mxu0 %v337
    %852 = vmatpush.msra.mxu0 %v333
    %853 = vmatpush.msra.mxu0 %v329
    %854 = vmatpush.msra.mxu0 %v325
    %855 = vmatpush.msra.mxu0 %v321
    %856 = vmatpush.msra.mxu0 %v317
    %857 = vmatpush.msra.mxu0 %v313
    %858 = vmatpush.msra.mxu0 %v309
    %859 = vmatpush.msra.mxu0 %v305
    %860 = vmatmul.f32.gmra.mxu0 %v818
    %v861 = vpop.f32.mrf.mxu0
    %v862 = vadd.f32 0.0, %v861
    %863 = vdwg.mxu0
    %864 = vmatpush.msra.mxu0 %v366
    %865 = vmatpush.msra.mxu0 %v362
    %866 = vmatpush.msra.mxu0 %v358
    %867 = vmatpush.msra.mxu0 %v354
    %868 = vmatpush.msra.mxu0 %v350
    %869 = vmatpush.msra.mxu0 %v346
    %870 = vmatpush.msra.mxu0 %v342
    %871 = vmatpush.msra.mxu0 %v338
    %872 = vmatpush.msra.mxu0 %v334
    %873 = vmatpush.msra.mxu0 %v330
    %874 = vmatpush.msra.mxu0 %v326
    %875 = vmatpush.msra.mxu0 %v322
    %876 = vmatpush.msra.mxu0 %v318
    %877 = vmatpush.msra.mxu0 %v314
    %878 = vmatpush.msra.mxu0 %v310
    %879 = vmatpush.msra.mxu0 %v306
    %880 = vmatmul.f32.gmra.mxu0 %v818
    %v881 = vpop.f32.mrf.mxu0
    %v882 = vadd.f32 0.0, %v881
    %883 = vdwg.mxu0
    %884 = vmatpush.msra.mxu0 %v367
    %885 = vmatpush.msra.mxu0 %v363
    %886 = vmatpush.msra.mxu0 %v359
    %887 = vmatpush.msra.mxu0 %v355
    %888 = vmatpush.msra.mxu0 %v351
    %889 = vmatpush.msra.mxu0 %v347
    %890 = vmatpush.msra.mxu0 %v343
    %891 = vmatpush.msra.mxu0 %v339
    %892 = vmatpush.msra.mxu0 %v335
    %893 = vmatpush.msra.mxu0 %v331
    %894 = vmatpush.msra.mxu0 %v327
    %895 = vmatpush.msra.mxu0 %v323
    %896 = vmatpush.msra.mxu0 %v319
    %897 = vmatpush.msra.mxu0 %v315
    %898 = vmatpush.msra.mxu0 %v311
    %899 = vmatpush.msra.mxu0 %v307
    %900 = vmatmul.f32.gmra.mxu0 %v818
    %v901 = vpop.f32.mrf.mxu0
    %v902 = vadd.f32 0.0, %v901
    %903 = vdwg.mxu0
    %v904 = vadd.f32 %v820, %v842
    %v905 = vadd.f32 %v821, %v862
    %v906 = vadd.f32 %v822, %v882
    %v907 = vadd.f32 %v823, %v902
    %v908 = vxor.u32 %v904, 2147483648
    %v909 = vmul.f32 %v908, 1.442695
    %v910 = vpow.pop %v909
    %v911 = vadd.f32 %v910, 1.0
    %v912 = vrcp.pop %v911
    %v913 = vmul.f32 %v911, %v912
    %v914 = vsub.f32 1.0, %v913
    %v915 = vmul.f32 %v912, %v914
    %v916 = vadd.f32 %v912, %v915
    %vm917 = vweird.f32 %v911
    %vm918 = vweird.f32 %v912
    %vm919 = vmor %vm917, %vm918
    %v920 = vsel %vm919, %v912, %v916
    %v921 = vand.u32 2147483647, %v911
    %vm922 = vcmp.eq.f32.partialorder %v921, 8.507059e+37
    %v923 = vand.u32 %v911, 2147483648
    %v924 = vor.u32 1.1754944e-38, %v923
    %v925 = vsel %vm922, %v924, %v920
    %v926 = vmul.f32 1.0, %v925
    %v927 = vxor.u32 %v905, 2147483648
    %v928 = vmul.f32 %v927, 1.442695
    %v929 = vpow.pop %v928
    %v930 = vadd.f32 %v929, 1.0
    %v931 = vrcp.pop %v930
    %v932 = vmul.f32 %v930, %v931
    %v933 = vsub.f32 1.0, %v932
    %v934 = vmul.f32 %v931, %v933
    %v935 = vadd.f32 %v931, %v934
    %vm936 = vweird.f32 %v930
    %vm937 = vweird.f32 %v931
    %vm938 = vmor %vm936, %vm937
    %v939 = vsel %vm938, %v931, %v935
    %v940 = vand.u32 2147483647, %v930
    %vm941 = vcmp.eq.f32.partialorder %v940, 8.507059e+37
    %v942 = vand.u32 %v930, 2147483648
    %v943 = vor.u32 1.1754944e-38, %v942
    %v944 = vsel %vm941, %v943, %v939
    %v945 = vmul.f32 1.0, %v944
    %v946 = vtanh.pop %v906
    %v947 = vxor.u32 %v907, 2147483648
    %v948 = vmul.f32 %v947, 1.442695
    %v949 = vpow.pop %v948
    %v950 = vadd.f32 %v949, 1.0
    %v951 = vrcp.pop %v950
    %v952 = vmul.f32 %v950, %v951
    %v953 = vsub.f32 1.0, %v952
    %v954 = vmul.f32 %v951, %v953
    %v955 = vadd.f32 %v951, %v954
    %vm956 = vweird.f32 %v950
    %vm957 = vweird.f32 %v951
    %vm958 = vmor %vm956, %vm957
    %v959 = vsel %vm958, %v951, %v955
    %v960 = vand.u32 2147483647, %v950
    %vm961 = vcmp.eq.f32.partialorder %v960, 8.507059e+37
    %v962 = vand.u32 %v950, 2147483648
    %v963 = vor.u32 1.1754944e-38, %v962
    %v964 = vsel %vm961, %v963, %v959
    %v965 = vmul.f32 1.0, %v964
    %v966 = vmul.f32 %v945, %v816
    %v967 = vmul.f32 %v926, %v946
    %v968 = vadd.f32 %v966, %v967
    %v969 = vtanh.pop %v968
    %v970 = vmul.f32 %v965, %v969
    %s971 = scalar_lea.vmem [#allocation2], 128
    %v972 = vld [vmem:[%s971] sm:$0xff]
    %v973 = vld [vmem:[%s971 + $0x8] sm:$0xff]
    %v974 = vld [vmem:[%s971 + $0x10] sm:$0xff]
    %v975 = vld [vmem:[%s971 + $0x18] sm:$0xff]
    %976 = vmatpush.msra.mxu0 %v364
    %977 = vmatpush.msra.mxu0 %v360
    %978 = vmatpush.msra.mxu0 %v356
    %979 = vmatpush.msra.mxu0 %v352
    %980 = vmatpush.msra.mxu0 %v348
    %981 = vmatpush.msra.mxu0 %v344
    %982 = vmatpush.msra.mxu0 %v340
    %983 = vmatpush.msra.mxu0 %v336
    %984 = vmatpush.msra.mxu0 %v332
    %985 = vmatpush.msra.mxu0 %v328
    %986 = vmatpush.msra.mxu0 %v324
    %987 = vmatpush.msra.mxu0 %v320
    %988 = vmatpush.msra.mxu0 %v316
    %989 = vmatpush.msra.mxu0 %v312
    %990 = vmatpush.msra.mxu0 %v308
    %991 = vmatpush.msra.mxu0 %v304
    %992 = vmatmul.f32.gmra.mxu0 %v970
    %v993 = vpop.f32.mrf.mxu0
    %v994 = vadd.f32 0.0, %v993
    %995 = vdwg.mxu0
    %996 = vmatpush.msra.mxu0 %v365
    %997 = vmatpush.msra.mxu0 %v361
    %998 = vmatpush.msra.mxu0 %v357
    %999 = vmatpush.msra.mxu0 %v353
    %1000 = vmatpush.msra.mxu0 %v349
    %1001 = vmatpush.msra.mxu0 %v345
    %1002 = vmatpush.msra.mxu0 %v341
    %1003 = vmatpush.msra.mxu0 %v337
    %1004 = vmatpush.msra.mxu0 %v333
    %1005 = vmatpush.msra.mxu0 %v329
    %1006 = vmatpush.msra.mxu0 %v325
    %1007 = vmatpush.msra.mxu0 %v321
    %1008 = vmatpush.msra.mxu0 %v317
    %1009 = vmatpush.msra.mxu0 %v313
    %1010 = vmatpush.msra.mxu0 %v309
    %1011 = vmatpush.msra.mxu0 %v305
    %1012 = vmatmul.f32.gmra.mxu0 %v970
    %v1013 = vpop.f32.mrf.mxu0
    %v1014 = vadd.f32 0.0, %v1013
    %1015 = vdwg.mxu0
    %1016 = vmatpush.msra.mxu0 %v366
    %1017 = vmatpush.msra.mxu0 %v362
    %1018 = vmatpush.msra.mxu0 %v358
    %1019 = vmatpush.msra.mxu0 %v354
    %1020 = vmatpush.msra.mxu0 %v350
    %1021 = vmatpush.msra.mxu0 %v346
    %1022 = vmatpush.msra.mxu0 %v342
    %1023 = vmatpush.msra.mxu0 %v338
    %1024 = vmatpush.msra.mxu0 %v334
    %1025 = vmatpush.msra.mxu0 %v330
    %1026 = vmatpush.msra.mxu0 %v326
    %1027 = vmatpush.msra.mxu0 %v322
    %1028 = vmatpush.msra.mxu0 %v318
    %1029 = vmatpush.msra.mxu0 %v314
    %1030 = vmatpush.msra.mxu0 %v310
    %1031 = vmatpush.msra.mxu0 %v306
    %1032 = vmatmul.f32.gmra.mxu0 %v970
    %v1033 = vpop.f32.mrf.mxu0
    %v1034 = vadd.f32 0.0, %v1033
    %1035 = vdwg.mxu0
    %1036 = vmatpush.msra.mxu0 %v367
    %1037 = vmatpush.msra.mxu0 %v363
    %1038 = vmatpush.msra.mxu0 %v359
    %1039 = vmatpush.msra.mxu0 %v355
    %1040 = vmatpush.msra.mxu0 %v351
    %1041 = vmatpush.msra.mxu0 %v347
    %1042 = vmatpush.msra.mxu0 %v343
    %1043 = vmatpush.msra.mxu0 %v339
    %1044 = vmatpush.msra.mxu0 %v335
    %1045 = vmatpush.msra.mxu0 %v331
    %1046 = vmatpush.msra.mxu0 %v327
    %1047 = vmatpush.msra.mxu0 %v323
    %1048 = vmatpush.msra.mxu0 %v319
    %1049 = vmatpush.msra.mxu0 %v315
    %1050 = vmatpush.msra.mxu0 %v311
    %1051 = vmatpush.msra.mxu0 %v307
    %1052 = vmatmul.f32.gmra.mxu0 %v970
    %v1053 = vpop.f32.mrf.mxu0
    %v1054 = vadd.f32 0.0, %v1053
    %1055 = vdwg.mxu0
    %v1056 = vadd.f32 %v972, %v994
    %v1057 = vadd.f32 %v973, %v1014
    %v1058 = vadd.f32 %v974, %v1034
    %v1059 = vadd.f32 %v975, %v1054
    %v1060 = vxor.u32 %v1056, 2147483648
    %v1061 = vmul.f32 %v1060, 1.442695
    %v1062 = vpow.pop %v1061
    %v1063 = vadd.f32 %v1062, 1.0
    %v1064 = vrcp.pop %v1063
    %v1065 = vmul.f32 %v1063, %v1064
    %v1066 = vsub.f32 1.0, %v1065
    %v1067 = vmul.f32 %v1064, %v1066
    %v1068 = vadd.f32 %v1064, %v1067
    %vm1069 = vweird.f32 %v1063
    %vm1070 = vweird.f32 %v1064
    %vm1071 = vmor %vm1069, %vm1070
    %v1072 = vsel %vm1071, %v1064, %v1068
    %v1073 = vand.u32 2147483647, %v1063
    %vm1074 = vcmp.eq.f32.partialorder %v1073, 8.507059e+37
    %v1075 = vand.u32 %v1063, 2147483648
    %v1076 = vor.u32 1.1754944e-38, %v1075
    %v1077 = vsel %vm1074, %v1076, %v1072
    %v1078 = vmul.f32 1.0, %v1077
    %v1079 = vxor.u32 %v1057, 2147483648
    %v1080 = vmul.f32 %v1079, 1.442695
    %v1081 = vpow.pop %v1080
    %v1082 = vadd.f32 %v1081, 1.0
    %v1083 = vrcp.pop %v1082
    %v1084 = vmul.f32 %v1082, %v1083
    %v1085 = vsub.f32 1.0, %v1084
    %v1086 = vmul.f32 %v1083, %v1085
    %v1087 = vadd.f32 %v1083, %v1086
    %vm1088 = vweird.f32 %v1082
    %vm1089 = vweird.f32 %v1083
    %vm1090 = vmor %vm1088, %vm1089
    %v1091 = vsel %vm1090, %v1083, %v1087
    %v1092 = vand.u32 2147483647, %v1082
    %vm1093 = vcmp.eq.f32.partialorder %v1092, 8.507059e+37
    %v1094 = vand.u32 %v1082, 2147483648
    %v1095 = vor.u32 1.1754944e-38, %v1094
    %v1096 = vsel %vm1093, %v1095, %v1091
    %v1097 = vmul.f32 1.0, %v1096
    %v1098 = vtanh.pop %v1058
    %v1099 = vxor.u32 %v1059, 2147483648
    %v1100 = vmul.f32 %v1099, 1.442695
    %v1101 = vpow.pop %v1100
    %v1102 = vadd.f32 %v1101, 1.0
    %v1103 = vrcp.pop %v1102
    %v1104 = vmul.f32 %v1102, %v1103
    %v1105 = vsub.f32 1.0, %v1104
    %v1106 = vmul.f32 %v1103, %v1105
    %v1107 = vadd.f32 %v1103, %v1106
    %vm1108 = vweird.f32 %v1102
    %vm1109 = vweird.f32 %v1103
    %vm1110 = vmor %vm1108, %vm1109
    %v1111 = vsel %vm1110, %v1103, %v1107
    %v1112 = vand.u32 2147483647, %v1102
    %vm1113 = vcmp.eq.f32.partialorder %v1112, 8.507059e+37
    %v1114 = vand.u32 %v1102, 2147483648
    %v1115 = vor.u32 1.1754944e-38, %v1114
    %v1116 = vsel %vm1113, %v1115, %v1111
    %v1117 = vmul.f32 1.0, %v1116
    %v1118 = vmul.f32 %v1097, %v968
    %v1119 = vmul.f32 %v1078, %v1098
    %v1120 = vadd.f32 %v1118, %v1119
    %v1121 = vtanh.pop %v1120
    %v1122 = vmul.f32 %v1117, %v1121
    %s1123 = scalar_lea.vmem [#allocation2], 160
    %v1124 = vld [vmem:[%s1123] sm:$0xff]
    %v1125 = vld [vmem:[%s1123 + $0x8] sm:$0xff]
    %v1126 = vld [vmem:[%s1123 + $0x10] sm:$0xff]
    %v1127 = vld [vmem:[%s1123 + $0x18] sm:$0xff]
    %1128 = vmatpush.msra.mxu0 %v364
    %1129 = vmatpush.msra.mxu0 %v360
    %1130 = vmatpush.msra.mxu0 %v356
    %1131 = vmatpush.msra.mxu0 %v352
    %1132 = vmatpush.msra.mxu0 %v348
    %1133 = vmatpush.msra.mxu0 %v344
    %1134 = vmatpush.msra.mxu0 %v340
    %1135 = vmatpush.msra.mxu0 %v336
    %1136 = vmatpush.msra.mxu0 %v332
    %1137 = vmatpush.msra.mxu0 %v328
    %1138 = vmatpush.msra.mxu0 %v324
    %1139 = vmatpush.msra.mxu0 %v320
    %1140 = vmatpush.msra.mxu0 %v316
    %1141 = vmatpush.msra.mxu0 %v312
    %1142 = vmatpush.msra.mxu0 %v308
    %1143 = vmatpush.msra.mxu0 %v304
    %1144 = vmatmul.f32.gmra.mxu0 %v1122
    %v1145 = vpop.f32.mrf.mxu0
    %v1146 = vadd.f32 0.0, %v1145
    %1147 = vdwg.mxu0
    %1148 = vmatpush.msra.mxu0 %v365
    %1149 = vmatpush.msra.mxu0 %v361
    %1150 = vmatpush.msra.mxu0 %v357
    %1151 = vmatpush.msra.mxu0 %v353
    %1152 = vmatpush.msra.mxu0 %v349
    %1153 = vmatpush.msra.mxu0 %v345
    %1154 = vmatpush.msra.mxu0 %v341
    %1155 = vmatpush.msra.mxu0 %v337
    %1156 = vmatpush.msra.mxu0 %v333
    %1157 = vmatpush.msra.mxu0 %v329
    %1158 = vmatpush.msra.mxu0 %v325
    %1159 = vmatpush.msra.mxu0 %v321
    %1160 = vmatpush.msra.mxu0 %v317
    %1161 = vmatpush.msra.mxu0 %v313
    %1162 = vmatpush.msra.mxu0 %v309
    %1163 = vmatpush.msra.mxu0 %v305
    %1164 = vmatmul.f32.gmra.mxu0 %v1122
    %v1165 = vpop.f32.mrf.mxu0
    %v1166 = vadd.f32 0.0, %v1165
    %1167 = vdwg.mxu0
    %1168 = vmatpush.msra.mxu0 %v366
    %1169 = vmatpush.msra.mxu0 %v362
    %1170 = vmatpush.msra.mxu0 %v358
    %1171 = vmatpush.msra.mxu0 %v354
    %1172 = vmatpush.msra.mxu0 %v350
    %1173 = vmatpush.msra.mxu0 %v346
    %1174 = vmatpush.msra.mxu0 %v342
    %1175 = vmatpush.msra.mxu0 %v338
    %1176 = vmatpush.msra.mxu0 %v334
    %1177 = vmatpush.msra.mxu0 %v330
    %1178 = vmatpush.msra.mxu0 %v326
    %1179 = vmatpush.msra.mxu0 %v322
    %1180 = vmatpush.msra.mxu0 %v318
    %1181 = vmatpush.msra.mxu0 %v314
    %1182 = vmatpush.msra.mxu0 %v310
    %1183 = vmatpush.msra.mxu0 %v306
    %1184 = vmatmul.f32.gmra.mxu0 %v1122
    %v1185 = vpop.f32.mrf.mxu0
    %v1186 = vadd.f32 0.0, %v1185
    %1187 = vdwg.mxu0
    %1188 = vmatpush.msra.mxu0 %v367
    %1189 = vmatpush.msra.mxu0 %v363
    %1190 = vmatpush.msra.mxu0 %v359
    %1191 = vmatpush.msra.mxu0 %v355
    %1192 = vmatpush.msra.mxu0 %v351
    %1193 = vmatpush.msra.mxu0 %v347
    %1194 = vmatpush.msra.mxu0 %v343
    %1195 = vmatpush.msra.mxu0 %v339
    %1196 = vmatpush.msra.mxu0 %v335
    %1197 = vmatpush.msra.mxu0 %v331
    %1198 = vmatpush.msra.mxu0 %v327
    %1199 = vmatpush.msra.mxu0 %v323
    %1200 = vmatpush.msra.mxu0 %v319
    %1201 = vmatpush.msra.mxu0 %v315
    %1202 = vmatpush.msra.mxu0 %v311
    %1203 = vmatpush.msra.mxu0 %v307
    %1204 = vmatmul.f32.gmra.mxu0 %v1122
    %v1205 = vpop.f32.mrf.mxu0
    %v1206 = vadd.f32 0.0, %v1205
    %1207 = vdwg.mxu0
    %v1208 = vadd.f32 %v1124, %v1146
    %v1209 = vadd.f32 %v1125, %v1166
    %v1210 = vadd.f32 %v1126, %v1186
    %v1211 = vadd.f32 %v1127, %v1206
    %v1212 = vxor.u32 %v1208, 2147483648
    %v1213 = vmul.f32 %v1212, 1.442695
    %v1214 = vpow.pop %v1213
    %v1215 = vadd.f32 %v1214, 1.0
    %v1216 = vrcp.pop %v1215
    %v1217 = vmul.f32 %v1215, %v1216
    %v1218 = vsub.f32 1.0, %v1217
    %v1219 = vmul.f32 %v1216, %v1218
    %v1220 = vadd.f32 %v1216, %v1219
    %vm1221 = vweird.f32 %v1215
    %vm1222 = vweird.f32 %v1216
    %vm1223 = vmor %vm1221, %vm1222
    %v1224 = vsel %vm1223, %v1216, %v1220
    %v1225 = vand.u32 2147483647, %v1215
    %vm1226 = vcmp.eq.f32.partialorder %v1225, 8.507059e+37
    %v1227 = vand.u32 %v1215, 2147483648
    %v1228 = vor.u32 1.1754944e-38, %v1227
    %v1229 = vsel %vm1226, %v1228, %v1224
    %v1230 = vmul.f32 1.0, %v1229
    %v1231 = vxor.u32 %v1209, 2147483648
    %v1232 = vmul.f32 %v1231, 1.442695
    %v1233 = vpow.pop %v1232
    %v1234 = vadd.f32 %v1233, 1.0
    %v1235 = vrcp.pop %v1234
    %v1236 = vmul.f32 %v1234, %v1235
    %v1237 = vsub.f32 1.0, %v1236
    %v1238 = vmul.f32 %v1235, %v1237
    %v1239 = vadd.f32 %v1235, %v1238
    %vm1240 = vweird.f32 %v1234
    %vm1241 = vweird.f32 %v1235
    %vm1242 = vmor %vm1240, %vm1241
    %v1243 = vsel %vm1242, %v1235, %v1239
    %v1244 = vand.u32 2147483647, %v1234
    %vm1245 = vcmp.eq.f32.partialorder %v1244, 8.507059e+37
    %v1246 = vand.u32 %v1234, 2147483648
    %v1247 = vor.u32 1.1754944e-38, %v1246
    %v1248 = vsel %vm1245, %v1247, %v1243
    %v1249 = vmul.f32 1.0, %v1248
    %v1250 = vtanh.pop %v1210
    %v1251 = vxor.u32 %v1211, 2147483648
    %v1252 = vmul.f32 %v1251, 1.442695
    %v1253 = vpow.pop %v1252
    %v1254 = vadd.f32 %v1253, 1.0
    %v1255 = vrcp.pop %v1254
    %v1256 = vmul.f32 %v1254, %v1255
    %v1257 = vsub.f32 1.0, %v1256
    %v1258 = vmul.f32 %v1255, %v1257
    %v1259 = vadd.f32 %v1255, %v1258
    %vm1260 = vweird.f32 %v1254
    %vm1261 = vweird.f32 %v1255
    %vm1262 = vmor %vm1260, %vm1261
    %v1263 = vsel %vm1262, %v1255, %v1259
    %v1264 = vand.u32 2147483647, %v1254
    %vm1265 = vcmp.eq.f32.partialorder %v1264, 8.507059e+37
    %v1266 = vand.u32 %v1254, 2147483648
    %v1267 = vor.u32 1.1754944e-38, %v1266
    %v1268 = vsel %vm1265, %v1267, %v1263
    %v1269 = vmul.f32 1.0, %v1268
    %v1270 = vmul.f32 %v1249, %v1120
    %v1271 = vmul.f32 %v1230, %v1250
    %v1272 = vadd.f32 %v1270, %v1271
    %v1273 = vtanh.pop %v1272
    %v1274 = vmul.f32 %v1269, %v1273
    %s1275 = scalar_lea.vmem [#allocation2], 192
    %v1276 = vld [vmem:[%s1275] sm:$0xff]
    %v1277 = vld [vmem:[%s1275 + $0x8] sm:$0xff]
    %v1278 = vld [vmem:[%s1275 + $0x10] sm:$0xff]
    %v1279 = vld [vmem:[%s1275 + $0x18] sm:$0xff]
    %1280 = vmatpush.msra.mxu0 %v364
    %1281 = vmatpush.msra.mxu0 %v360
    %1282 = vmatpush.msra.mxu0 %v356
    %1283 = vmatpush.msra.mxu0 %v352
    %1284 = vmatpush.msra.mxu0 %v348
    %1285 = vmatpush.msra.mxu0 %v344
    %1286 = vmatpush.msra.mxu0 %v340
    %1287 = vmatpush.msra.mxu0 %v336
    %1288 = vmatpush.msra.mxu0 %v332
    %1289 = vmatpush.msra.mxu0 %v328
    %1290 = vmatpush.msra.mxu0 %v324
    %1291 = vmatpush.msra.mxu0 %v320
    %1292 = vmatpush.msra.mxu0 %v316
    %1293 = vmatpush.msra.mxu0 %v312
    %1294 = vmatpush.msra.mxu0 %v308
    %1295 = vmatpush.msra.mxu0 %v304
    %1296 = vmatmul.f32.gmra.mxu0 %v1274
    %v1297 = vpop.f32.mrf.mxu0
    %v1298 = vadd.f32 0.0, %v1297
    %1299 = vdwg.mxu0
    %1300 = vmatpush.msra.mxu0 %v365
    %1301 = vmatpush.msra.mxu0 %v361
    %1302 = vmatpush.msra.mxu0 %v357
    %1303 = vmatpush.msra.mxu0 %v353
    %1304 = vmatpush.msra.mxu0 %v349
    %1305 = vmatpush.msra.mxu0 %v345
    %1306 = vmatpush.msra.mxu0 %v341
    %1307 = vmatpush.msra.mxu0 %v337
    %1308 = vmatpush.msra.mxu0 %v333
    %1309 = vmatpush.msra.mxu0 %v329
    %1310 = vmatpush.msra.mxu0 %v325
    %1311 = vmatpush.msra.mxu0 %v321
    %1312 = vmatpush.msra.mxu0 %v317
    %1313 = vmatpush.msra.mxu0 %v313
    %1314 = vmatpush.msra.mxu0 %v309
    %1315 = vmatpush.msra.mxu0 %v305
    %1316 = vmatmul.f32.gmra.mxu0 %v1274
    %v1317 = vpop.f32.mrf.mxu0
    %v1318 = vadd.f32 0.0, %v1317
    %1319 = vdwg.mxu0
    %1320 = vmatpush.msra.mxu0 %v366
    %1321 = vmatpush.msra.mxu0 %v362
    %1322 = vmatpush.msra.mxu0 %v358
    %1323 = vmatpush.msra.mxu0 %v354
    %1324 = vmatpush.msra.mxu0 %v350
    %1325 = vmatpush.msra.mxu0 %v346
    %1326 = vmatpush.msra.mxu0 %v342
    %1327 = vmatpush.msra.mxu0 %v338
    %1328 = vmatpush.msra.mxu0 %v334
    %1329 = vmatpush.msra.mxu0 %v330
    %1330 = vmatpush.msra.mxu0 %v326
    %1331 = vmatpush.msra.mxu0 %v322
    %1332 = vmatpush.msra.mxu0 %v318
    %1333 = vmatpush.msra.mxu0 %v314
    %1334 = vmatpush.msra.mxu0 %v310
    %1335 = vmatpush.msra.mxu0 %v306
    %1336 = vmatmul.f32.gmra.mxu0 %v1274
    %v1337 = vpop.f32.mrf.mxu0
    %v1338 = vadd.f32 0.0, %v1337
    %1339 = vdwg.mxu0
    %1340 = vmatpush.msra.mxu0 %v367
    %1341 = vmatpush.msra.mxu0 %v363
    %1342 = vmatpush.msra.mxu0 %v359
    %1343 = vmatpush.msra.mxu0 %v355
    %1344 = vmatpush.msra.mxu0 %v351
    %1345 = vmatpush.msra.mxu0 %v347
    %1346 = vmatpush.msra.mxu0 %v343
    %1347 = vmatpush.msra.mxu0 %v339
    %1348 = vmatpush.msra.mxu0 %v335
    %1349 = vmatpush.msra.mxu0 %v331
    %1350 = vmatpush.msra.mxu0 %v327
    %1351 = vmatpush.msra.mxu0 %v323
    %1352 = vmatpush.msra.mxu0 %v319
    %1353 = vmatpush.msra.mxu0 %v315
    %1354 = vmatpush.msra.mxu0 %v311
    %1355 = vmatpush.msra.mxu0 %v307
    %1356 = vmatmul.f32.gmra.mxu0 %v1274
    %v1357 = vpop.f32.mrf.mxu0
    %v1358 = vadd.f32 0.0, %v1357
    %1359 = vdwg.mxu0
    %v1360 = vadd.f32 %v1276, %v1298
    %v1361 = vadd.f32 %v1277, %v1318
    %v1362 = vadd.f32 %v1278, %v1338
    %v1363 = vadd.f32 %v1279, %v1358
    %v1364 = vxor.u32 %v1360, 2147483648
    %v1365 = vmul.f32 %v1364, 1.442695
    %v1366 = vpow.pop %v1365
    %v1367 = vadd.f32 %v1366, 1.0
    %v1368 = vrcp.pop %v1367
    %v1369 = vmul.f32 %v1367, %v1368
    %v1370 = vsub.f32 1.0, %v1369
    %v1371 = vmul.f32 %v1368, %v1370
    %v1372 = vadd.f32 %v1368, %v1371
    %vm1373 = vweird.f32 %v1367
    %vm1374 = vweird.f32 %v1368
    %vm1375 = vmor %vm1373, %vm1374
    %v1376 = vsel %vm1375, %v1368, %v1372
    %v1377 = vand.u32 2147483647, %v1367
    %vm1378 = vcmp.eq.f32.partialorder %v1377, 8.507059e+37
    %v1379 = vand.u32 %v1367, 2147483648
    %v1380 = vor.u32 1.1754944e-38, %v1379
    %v1381 = vsel %vm1378, %v1380, %v1376
    %v1382 = vmul.f32 1.0, %v1381
    %v1383 = vxor.u32 %v1361, 2147483648
    %v1384 = vmul.f32 %v1383, 1.442695
    %v1385 = vpow.pop %v1384
    %v1386 = vadd.f32 %v1385, 1.0
    %v1387 = vrcp.pop %v1386
    %v1388 = vmul.f32 %v1386, %v1387
    %v1389 = vsub.f32 1.0, %v1388
    %v1390 = vmul.f32 %v1387, %v1389
    %v1391 = vadd.f32 %v1387, %v1390
    %vm1392 = vweird.f32 %v1386
    %vm1393 = vweird.f32 %v1387
    %vm1394 = vmor %vm1392, %vm1393
    %v1395 = vsel %vm1394, %v1387, %v1391
    %v1396 = vand.u32 2147483647, %v1386
    %vm1397 = vcmp.eq.f32.partialorder %v1396, 8.507059e+37
    %v1398 = vand.u32 %v1386, 2147483648
    %v1399 = vor.u32 1.1754944e-38, %v1398
    %v1400 = vsel %vm1397, %v1399, %v1395
    %v1401 = vmul.f32 1.0, %v1400
    %v1402 = vtanh.pop %v1362
    %v1403 = vxor.u32 %v1363, 2147483648
    %v1404 = vmul.f32 %v1403, 1.442695
    %v1405 = vpow.pop %v1404
    %v1406 = vadd.f32 %v1405, 1.0
    %v1407 = vrcp.pop %v1406
    %v1408 = vmul.f32 %v1406, %v1407
    %v1409 = vsub.f32 1.0, %v1408
    %v1410 = vmul.f32 %v1407, %v1409
    %v1411 = vadd.f32 %v1407, %v1410
    %vm1412 = vweird.f32 %v1406
    %vm1413 = vweird.f32 %v1407
    %vm1414 = vmor %vm1412, %vm1413
    %v1415 = vsel %vm1414, %v1407, %v1411
    %v1416 = vand.u32 2147483647, %v1406
    %vm1417 = vcmp.eq.f32.partialorder %v1416, 8.507059e+37
    %v1418 = vand.u32 %v1406, 2147483648
    %v1419 = vor.u32 1.1754944e-38, %v1418
    %v1420 = vsel %vm1417, %v1419, %v1415
    %v1421 = vmul.f32 1.0, %v1420
    %v1422 = vmul.f32 %v1401, %v1272
    %v1423 = vmul.f32 %v1382, %v1402
    %v1424 = vadd.f32 %v1422, %v1423
    %v1425 = vtanh.pop %v1424
    %v1426 = vmul.f32 %v1421, %v1425
    %s1427 = scalar_lea.vmem [#allocation2], 224
    %v1428 = vld [vmem:[%s1427] sm:$0xff]
    %v1429 = vld [vmem:[%s1427 + $0x8] sm:$0xff]
    %v1430 = vld [vmem:[%s1427 + $0x10] sm:$0xff]
    %v1431 = vld [vmem:[%s1427 + $0x18] sm:$0xff]
    %1432 = vmatpush.msra.mxu0 %v364
    %1433 = vmatpush.msra.mxu0 %v360
    %1434 = vmatpush.msra.mxu0 %v356
    %1435 = vmatpush.msra.mxu0 %v352
    %1436 = vmatpush.msra.mxu0 %v348
    %1437 = vmatpush.msra.mxu0 %v344
    %1438 = vmatpush.msra.mxu0 %v340
    %1439 = vmatpush.msra.mxu0 %v336
    %1440 = vmatpush.msra.mxu0 %v332
    %1441 = vmatpush.msra.mxu0 %v328
    %1442 = vmatpush.msra.mxu0 %v324
    %1443 = vmatpush.msra.mxu0 %v320
    %1444 = vmatpush.msra.mxu0 %v316
    %1445 = vmatpush.msra.mxu0 %v312
    %1446 = vmatpush.msra.mxu0 %v308
    %1447 = vmatpush.msra.mxu0 %v304
    %1448 = vmatmul.f32.gmra.mxu0 %v1426
    %v1449 = vpop.f32.mrf.mxu0
    %v1450 = vadd.f32 0.0, %v1449
    %1451 = vdwg.mxu0
    %1452 = vmatpush.msra.mxu0 %v365
    %1453 = vmatpush.msra.mxu0 %v361
    %1454 = vmatpush.msra.mxu0 %v357
    %1455 = vmatpush.msra.mxu0 %v353
    %1456 = vmatpush.msra.mxu0 %v349
    %1457 = vmatpush.msra.mxu0 %v345
    %1458 = vmatpush.msra.mxu0 %v341
    %1459 = vmatpush.msra.mxu0 %v337
    %1460 = vmatpush.msra.mxu0 %v333
    %1461 = vmatpush.msra.mxu0 %v329
    %1462 = vmatpush.msra.mxu0 %v325
    %1463 = vmatpush.msra.mxu0 %v321
    %1464 = vmatpush.msra.mxu0 %v317
    %1465 = vmatpush.msra.mxu0 %v313
    %1466 = vmatpush.msra.mxu0 %v309
    %1467 = vmatpush.msra.mxu0 %v305
    %1468 = vmatmul.f32.gmra.mxu0 %v1426
    %v1469 = vpop.f32.mrf.mxu0
    %v1470 = vadd.f32 0.0, %v1469
    %1471 = vdwg.mxu0
    %1472 = vmatpush.msra.mxu0 %v366
    %1473 = vmatpush.msra.mxu0 %v362
    %1474 = vmatpush.msra.mxu0 %v358
    %1475 = vmatpush.msra.mxu0 %v354
    %1476 = vmatpush.msra.mxu0 %v350
    %1477 = vmatpush.msra.mxu0 %v346
    %1478 = vmatpush.msra.mxu0 %v342
    %1479 = vmatpush.msra.mxu0 %v338
    %1480 = vmatpush.msra.mxu0 %v334
    %1481 = vmatpush.msra.mxu0 %v330
    %1482 = vmatpush.msra.mxu0 %v326
    %1483 = vmatpush.msra.mxu0 %v322
    %1484 = vmatpush.msra.mxu0 %v318
    %1485 = vmatpush.msra.mxu0 %v314
    %1486 = vmatpush.msra.mxu0 %v310
    %1487 = vmatpush.msra.mxu0 %v306
    %1488 = vmatmul.f32.gmra.mxu0 %v1426
    %v1489 = vpop.f32.mrf.mxu0
    %v1490 = vadd.f32 0.0, %v1489
    %1491 = vdwg.mxu0
    %1492 = vmatpush.msra.mxu0 %v367
    %1493 = vmatpush.msra.mxu0 %v363
    %1494 = vmatpush.msra.mxu0 %v359
    %1495 = vmatpush.msra.mxu0 %v355
    %1496 = vmatpush.msra.mxu0 %v351
    %1497 = vmatpush.msra.mxu0 %v347
    %1498 = vmatpush.msra.mxu0 %v343
    %1499 = vmatpush.msra.mxu0 %v339
    %1500 = vmatpush.msra.mxu0 %v335
    %1501 = vmatpush.msra.mxu0 %v331
    %1502 = vmatpush.msra.mxu0 %v327
    %1503 = vmatpush.msra.mxu0 %v323
    %1504 = vmatpush.msra.mxu0 %v319
    %1505 = vmatpush.msra.mxu0 %v315
    %1506 = vmatpush.msra.mxu0 %v311
    %1507 = vmatpush.msra.mxu0 %v307
    %1508 = vmatmul.f32.gmra.mxu0 %v1426
    %v1509 = vpop.f32.mrf.mxu0
    %v1510 = vadd.f32 0.0, %v1509
    %1511 = vdwg.mxu0
    %v1512 = vadd.f32 %v1428, %v1450
    %v1513 = vadd.f32 %v1429, %v1470
    %v1514 = vadd.f32 %v1430, %v1490
    %v1515 = vadd.f32 %v1431, %v1510
    %v1516 = vxor.u32 %v1512, 2147483648
    %v1517 = vmul.f32 %v1516, 1.442695
    %v1518 = vpow.pop %v1517
    %v1519 = vadd.f32 %v1518, 1.0
    %v1520 = vrcp.pop %v1519
    %v1521 = vmul.f32 %v1519, %v1520
    %v1522 = vsub.f32 1.0, %v1521
    %v1523 = vmul.f32 %v1520, %v1522
    %v1524 = vadd.f32 %v1520, %v1523
    %vm1525 = vweird.f32 %v1519
    %vm1526 = vweird.f32 %v1520
    %vm1527 = vmor %vm1525, %vm1526
    %v1528 = vsel %vm1527, %v1520, %v1524
    %v1529 = vand.u32 2147483647, %v1519
    %vm1530 = vcmp.eq.f32.partialorder %v1529, 8.507059e+37
    %v1531 = vand.u32 %v1519, 2147483648
    %v1532 = vor.u32 1.1754944e-38, %v1531
    %v1533 = vsel %vm1530, %v1532, %v1528
    %v1534 = vmul.f32 1.0, %v1533
    %v1535 = vxor.u32 %v1513, 2147483648
    %v1536 = vmul.f32 %v1535, 1.442695
    %v1537 = vpow.pop %v1536
    %v1538 = vadd.f32 %v1537, 1.0
    %v1539 = vrcp.pop %v1538
    %v1540 = vmul.f32 %v1538, %v1539
    %v1541 = vsub.f32 1.0, %v1540
    %v1542 = vmul.f32 %v1539, %v1541
    %v1543 = vadd.f32 %v1539, %v1542
    %vm1544 = vweird.f32 %v1538
    %vm1545 = vweird.f32 %v1539
    %vm1546 = vmor %vm1544, %vm1545
    %v1547 = vsel %vm1546, %v1539, %v1543
    %v1548 = vand.u32 2147483647, %v1538
    %vm1549 = vcmp.eq.f32.partialorder %v1548, 8.507059e+37
    %v1550 = vand.u32 %v1538, 2147483648
    %v1551 = vor.u32 1.1754944e-38, %v1550
    %v1552 = vsel %vm1549, %v1551, %v1547
    %v1553 = vmul.f32 1.0, %v1552
    %v1554 = vtanh.pop %v1514
    %v1555 = vxor.u32 %v1515, 2147483648
    %v1556 = vmul.f32 %v1555, 1.442695
    %v1557 = vpow.pop %v1556
    %v1558 = vadd.f32 %v1557, 1.0
    %v1559 = vrcp.pop %v1558
    %v1560 = vmul.f32 %v1558, %v1559
    %v1561 = vsub.f32 1.0, %v1560
    %v1562 = vmul.f32 %v1559, %v1561
    %v1563 = vadd.f32 %v1559, %v1562
    %vm1564 = vweird.f32 %v1558
    %vm1565 = vweird.f32 %v1559
    %vm1566 = vmor %vm1564, %vm1565
    %v1567 = vsel %vm1566, %v1559, %v1563
    %v1568 = vand.u32 2147483647, %v1558
    %vm1569 = vcmp.eq.f32.partialorder %v1568, 8.507059e+37
    %v1570 = vand.u32 %v1558, 2147483648
    %v1571 = vor.u32 1.1754944e-38, %v1570
    %v1572 = vsel %vm1569, %v1571, %v1567
    %v1573 = vmul.f32 1.0, %v1572
    %v1574 = vmul.f32 %v1553, %v1424
    %v1575 = vmul.f32 %v1534, %v1554
    %v1576 = vadd.f32 %v1574, %v1575
    %v1577 = vtanh.pop %v1576
    %v1578 = vmul.f32 %v1573, %v1577
    %v1579 = vld [vmem:[%s4] sm:$0x1]
    %v1581 = vperm.slane %v1579, 0
    %v1583 = vmul.f32 %v1578, %v1581
    %1584 = vadd.xlane.f32.xlu0 %v1583
    %v1585 = vpop.xlane.xlu0 %1584
    %v1586 = vld [vmem:[#allocation3] sm:$0x1]
    %v1588 = vperm.slane %v1586, 0
    %v1590 = vadd.f32 %v1585, %v1588
    %vm1591 = vcmask 7168
    %1592 = vst.msk [vmem:[%s6] sm:$0xff] %vm1591, %v1590
    // Predicated region
    $region30: #{tpu_custom_call.1} parent=1 // pred_check
      _
    $region31: #{tpu_custom_call.1} parent=1 // pred_check_branch
      %1594 = sbr.rel (0) target = $region33
    $region32: #{tpu_custom_call.1} parent=1 // pred_region
      _
    $region33: #{tpu_custom_call.1} parent=1 // pred_fallthru
      _
    // Predicated region
    $region34: #{tpu_custom_call.1} parent=1 // pred_check
      _
    $region35: #{tpu_custom_call.1} parent=1 // pred_check_branch
      %1596 = sbr.rel (0) target = $region37
    $region36: #{tpu_custom_call.1} parent=1 // pred_region
      _
    $region37: #{tpu_custom_call.1} parent=1 // pred_fallthru
      _
    %1597 = vsyncpa [#allocation5], 1

</llo_original>
